<compile_context>
chip_gen: v6e
topology: v6e:2x2x1
jax: 0.10.0
libtpu: 0.0.40
codegen_flags: <defaults>
</compile_context>

<pallas_src>
import math
from functools import partial

import numpy as np
import jax
import jax.numpy as jnp
from jax.experimental import pallas as pl
from jax.experimental.pallas import tpu as pltpu

# ---------------------------------------------------------------------------
# "Constants" the original module pulls from external SMPL tables; defined
# deterministically in-script (synthetic kernel, no checkpoint load).
# ---------------------------------------------------------------------------
part_names = ['pelvis', 'left_hip', 'right_hip', 'spine1', 'spine2', 'spine3',
              'neck', 'head', 'left_knee']
body_names = ['pelvis', 'left_hip', 'right_hip', 'spine1', 'spine2', 'spine3']
body_index = [part_names.index(item) for item in body_names]          # [0..5]

NUM_PARTS = len(part_names)                                            # 9
mean_part_width_ratio = [0.12, 0.10, 0.10, 0.15, 0.16, 0.17, 0.08, 0.09, 0.07]
mean_bone_len         = [0.25, 0.40, 0.40, 0.12, 0.13, 0.14, 0.10, 0.11, 0.38]

N_FREQS = 4                                             # multires = 4
FREQS = [2.0 ** i * math.pi for i in range(N_FREQS)]    # [1,2,4,8] * pi
IN_FEATS = 2 * len(body_index)                          # 12
X_FEATS = IN_FEATS + 1                                  # 12 feats + constant 1
EMB_DIM = IN_FEATS * (1 + 2 * N_FREQS)                  # 108 (== 12*9)
HIDDEN = 512
OUT_DIM = 3
LANE = 128                                              # padded emb width

# ---------------------------------------------------------------------------
# Static (unscaled) embedding pattern.  Column c = 12*g + j selects input
# feature j scaled by _SCALES[g]; _PHASES[g] is added via the constant-one
# 13th input feature (cos(t) == sin(t + pi/2)).  g=0 is the identity group;
# columns 108:128 are zero padding.  _SIN_MASK marks the sin/cos columns.
# ---------------------------------------------------------------------------
_SCALES = [1.0] + [f for f in FREQS for _ in (0, 1)]                   # 9 groups
_PHASES = [0.0] + [p for _ in FREQS for p in (0.0, math.pi / 2.0)]
_BASE = np.zeros((X_FEATS, LANE), np.float32)           # row 12 = phase row
_SIN_MASK = np.zeros((1, LANE), np.float32)
for _g, (_s, _p) in enumerate(zip(_SCALES, _PHASES)):
    _cols = _g * IN_FEATS + np.arange(IN_FEATS)
    _BASE[np.arange(IN_FEATS), _cols] = _s
    _BASE[IN_FEATS, _cols] = _p
    if _g > 0:
        _SIN_MASK[0, _cols] = 1.0


# ---------------------------------------------------------------------------
# Pallas kernel: fused positional embedding + Linear / Tanh / Linear MLP.
# ---------------------------------------------------------------------------
def _beta2meas_kernel(x_ref, fm_ref, mask_ref, w1h_ref, w1l_ref, b1_ref,
                      w2h_ref, w2l_ref, b2_ref, out_ref):
    f32, bf16 = jnp.float32, jnp.bfloat16

    # Positional embedding: one tiny full-precision f32 matmul maps the 13
    # inputs (12 real + constant 1 carrying the phase) onto the lane-dense
    # 128-wide layout with 1/(ratio*3) and per-column frequency folded in;
    # a single sin then covers every sin/cos column.
    x = x_ref[...]                                               # (TB, 13)
    ang = jnp.dot(x, fm_ref[...], preferred_element_type=f32)    # (TB, 128)
    is_sin = jnp.broadcast_to(mask_ref[...], ang.shape) > 0.0
    emb = jnp.where(is_sin, jnp.sin(ang), ang)                   # (TB, 128)

    # Linear(108->512, K padded to 128) as a bf16x3 split-float product:
    # three native bf16 MXU passes; weight hi/lo halves are precomputed and
    # stay VMEM-resident across grid steps.
    emb_hi = emb.astype(bf16)
    emb_lo = (emb - emb_hi.astype(f32)).astype(bf16)
    h = jnp.dot(emb_hi, w1h_ref[...], preferred_element_type=f32)
    h = h + jnp.dot(emb_hi, w1l_ref[...], preferred_element_type=f32)
    h = h + jnp.dot(emb_lo, w1h_ref[...], preferred_element_type=f32)
    h = jnp.tanh(h + b1_ref[...])                                # (TB, 512) EUP

    # Linear(512->3, N padded to 128), bf16x3 again; keep the 3 real columns.
    h_hi = h.astype(bf16)
    h_lo = (h - h_hi.astype(f32)).astype(bf16)
    o = jnp.dot(h_hi, w2h_ref[...], preferred_element_type=f32)
    o = o + jnp.dot(h_hi, w2l_ref[...], preferred_element_type=f32)
    o = o + jnp.dot(h_lo, w2h_ref[...], preferred_element_type=f32)
    o = o + b2_ref[...]                                          # (TB, 128)
    out_ref[...] = o[:, :OUT_DIM]                                # (TB, 3)


# ---------------------------------------------------------------------------
# One-time constant preparation (hoisted out of the per-call path).
# ---------------------------------------------------------------------------
def _split_bf16(w):
    hi = w.astype(jnp.bfloat16)
    lo = (w - hi.astype(jnp.float32)).astype(jnp.bfloat16)
    return hi, lo


def prepare_constants(params):
    """Build the kernel constants once; reuse the returned dict across calls."""
    ratio = params["body_normed_ratio"][0]                       # (12,)
    # body_normed_ratio[:6] *= body_normed_ratio[6:] ; x_normed = x/ratio/3
    ratio_adj = jnp.concatenate([ratio[:6] * ratio[6:], ratio[6:]])
    inv_ratio = 1.0 / (ratio_adj * 3.0)                          # (12,)

    base = jnp.asarray(_BASE)                                    # (13, 128)
    fm = jnp.concatenate([base[:IN_FEATS] * inv_ratio[:, None],  # scaled feats
                          base[IN_FEATS:]], axis=0)              # phase row

    w1 = jnp.zeros((LANE, HIDDEN), jnp.float32).at[:EMB_DIM, :].set(params["w1"])
    w2 = jnp.zeros((HIDDEN, LANE), jnp.float32).at[:, :OUT_DIM].set(params["w2"])
    b2 = jnp.zeros((1, LANE), jnp.float32).at[:, :OUT_DIM].set(params["b2"])
    w1_hi, w1_lo = _split_bf16(w1)
    w2_hi, w2_lo = _split_bf16(w2)

    prep = {
        "fm": fm, "mask": jnp.asarray(_SIN_MASK),
        "w1_hi": w1_hi, "w1_lo": w1_lo, "w1_f32": w1, "b1": params["b1"],
        "w2_hi": w2_hi, "w2_lo": w2_lo, "w2_f32": w2, "b2": b2,
    }
    return jax.block_until_ready(prep)


# ---------------------------------------------------------------------------
# Tiling policy / dense fallback
# ---------------------------------------------------------------------------
_HIGHEST = jax.lax.Precision.HIGHEST
_MIN_TB = 64              # never shrink grid steps below this many rows
_SMALL_B_FALLBACK = 32    # below this, plain XLA beats the custom-call cost
_MAX_TB = 2048            # keeps the VMEM working set well under the limit


def _round8(n):
    return ((n + 7) // 8) * 8


def _pick_tb(batch, block_b):
    block_b = max(8, min(int(block_b), _MAX_TB))
    b8 = _round8(batch)
    if b8 <= _MIN_TB:
        return min(block_b, b8) if block_b < b8 else b8
    # Aim for >= 4 grid steps when the batch allows it (v7x: both TensorCores
    # get >= 2 steps; all chips amortize the ~0.35us per-step pipeline cost).
    tb = _round8(pl.cdiv(b8, 4))
    return min(block_b, max(_MIN_TB, tb))


def _dense_forward(x13, prep):
    # Tiny-batch path: plain XLA at full f32 precision (no custom-call /
    # weight-DMA fixed cost when the MXU would be idle anyway).
    ang = jnp.dot(x13, prep["fm"], precision=_HIGHEST)
    emb = jnp.where(prep["mask"] > 0.0, jnp.sin(ang), ang)
    h = jnp.tanh(jnp.dot(emb, prep["w1_f32"], precision=_HIGHEST) + prep["b1"])
    out = jnp.dot(h, prep["w2_f32"], precision=_HIGHEST) + prep["b2"]
    return out[:, :OUT_DIM]


# ---------------------------------------------------------------------------
# Wrapper: batch grid, VMEM-resident constants, 3-wide output
# ---------------------------------------------------------------------------
@partial(jax.jit, static_argnames=("block_b", "use_pallas"))
def beta2measurement(part_widths, bone_len, prepared, *, block_b=1024,
                     use_pallas=None):
    """Forward pass. `prepared` must come from prepare_constants(params)."""
    nb = len(body_index)        # body_index == list(range(6)) -> static slices
    B = part_widths.shape[0]
    x13 = jnp.concatenate(
        [part_widths[:, :nb].astype(jnp.float32),
         bone_len[:, :nb].astype(jnp.float32),
         jnp.ones((B, 1), jnp.float32)], axis=1)                  # (B, 13)

    if use_pallas is None:
        use_pallas = B >= _SMALL_B_FALLBACK
    if not use_pallas:
        return _dense_forward(x13, prepared)

    tb = _pick_tb(B, block_b)
    b_pad = pl.cdiv(B, tb) * tb
    if b_pad != B:
        x13 = jnp.pad(x13, ((0, b_pad - B), (0, 0)))
    grid = (b_pad // tb,)

    w_bytes = (2 * 2 * (LANE * HIDDEN + HIDDEN * LANE)            # bf16 hi/lo
               + 4 * (X_FEATS * LANE + LANE + HIDDEN + LANE))     # f32 consts
    cost = pl.CostEstimate(
        flops=int(b_pad * (2 * X_FEATS * LANE
                           + 6 * LANE * HIDDEN + 6 * HIDDEN * LANE)),
        transcendentals=int(b_pad * (LANE + HIDDEN)),
        bytes_accessed=int(4 * b_pad * (X_FEATS + OUT_DIM) + w_bytes),
    )

    const = lambda i: (0, 0)    # constants: VMEM-resident, not re-DMA'd
    row = lambda i: (i, 0)
    out = pl.pallas_call(
        _beta2meas_kernel,
        out_shape=jax.ShapeDtypeStruct((b_pad, OUT_DIM), jnp.float32),
        grid=grid,
        in_specs=[
            pl.BlockSpec((tb, X_FEATS), row),      # x (12 feats + constant 1)
            pl.BlockSpec((X_FEATS, LANE), const),  # fused embedding matrix
            pl.BlockSpec((1, LANE), const),        # sin-column mask
            pl.BlockSpec((LANE, HIDDEN), const),   # W1 hi (bf16, K padded)
            pl.BlockSpec((LANE, HIDDEN), const),   # W1 lo (bf16)
            pl.BlockSpec((1, HIDDEN), const),      # b1
            pl.BlockSpec((HIDDEN, LANE), const),   # W2 hi (bf16, N padded)
            pl.BlockSpec((HIDDEN, LANE), const),   # W2 lo (bf16)
            pl.BlockSpec((1, LANE), const),        # b2 (N padded)
        ],
        out_specs=pl.BlockSpec((tb, OUT_DIM), row),
        compiler_params=pltpu.CompilerParams(
            dimension_semantics=("parallel",),     # v7x: shard batch across TCs
            vmem_limit_bytes=32 * 1024 * 1024),    # v5e default (16 MiB) is tight
        cost_estimate=cost,
    )(x13, prepared["fm"], prepared["mask"],
      prepared["w1_hi"], prepared["w1_lo"], prepared["b1"],
      prepared["w2_hi"], prepared["w2_lo"], prepared["b2"])

    return out[:B]


# ---------------------------------------------------------------------------
# Pure-JAX reference (exact PyTorch-module semantics, full f32 precision)
# ---------------------------------------------------------------------------
def beta2measurement_ref(part_widths, bone_len, params):
    idx = jnp.asarray(body_index, dtype=jnp.int32)
    ratio = params["body_normed_ratio"][0]                      # (12,)
    ratio_adj = jnp.concatenate([ratio[:6] * ratio[6:], ratio[6:]])
    x = jnp.concatenate([part_widths[:, idx], bone_len[:, idx]], axis=1)
    x_normed = x / ratio_adj / 3.0
    feats = [x_normed]
    for f in FREQS:
        feats.append(jnp.sin(x_normed * f))
        feats.append(jnp.cos(x_normed * f))
    emb = jnp.concatenate(feats, axis=-1)
    h = jnp.tanh(jnp.dot(emb, params["w1"], precision=_HIGHEST) + params["b1"])
    return jnp.dot(h, params["w2"], precision=_HIGHEST) + params["b2"]


# ---------------------------------------------------------------------------
# Deterministic parameter init
# ---------------------------------------------------------------------------
def make_params():
    width_ratio = jnp.asarray(mean_part_width_ratio, jnp.float32)[
        jnp.asarray(body_index)]
    bone = jnp.asarray(mean_bone_len, jnp.float32)[jnp.asarray(body_index)]
    body_normed_ratio = jnp.concatenate([width_ratio, bone])[None, :]   # (1,12)

    k = jax.random.PRNGKey(0)
    k1, k2, k3, k4 = jax.random.split(k, 4)
    # nn.Linear-style uniform init; weights stored transposed (in, out).
    lim1 = 1.0 / math.sqrt(EMB_DIM)
    lim2 = 1.0 / math.sqrt(HIDDEN)
    return {
        "body_normed_ratio": body_normed_ratio,
        "w1": jax.random.uniform(k1, (EMB_DIM, HIDDEN), jnp.float32, -lim1, lim1),
        "b1": jax.random.uniform(k2, (1, HIDDEN), jnp.float32, -lim1, lim1),
        "w2": jax.random.uniform(k3, (HIDDEN, OUT_DIM), jnp.float32, -lim2, lim2),
        "b2": jax.random.uniform(k4, (1, OUT_DIM), jnp.float32, -lim2, lim2),
    }


if __name__ == "__main__":
    params = make_params()
    prepared = prepare_constants(params)     # hoisted: built once, reused below

    # Small-shape check (B=2), forced through the Pallas kernel.
    B = 2
    kw, kb = jax.random.split(jax.random.PRNGKey(0))
    part_widths = jax.random.uniform(kw, (B, NUM_PARTS), jnp.float32, 0.05, 0.3)
    bone_len = jax.random.uniform(kb, (B, NUM_PARTS), jnp.float32, 0.1, 0.5)

    out = jax.block_until_ready(
        beta2measurement(part_widths, bone_len, prepared, use_pallas=True))
    ref = beta2measurement_ref(part_widths, bone_len, params)
    assert out.shape == (B, OUT_DIM)
    assert jnp.allclose(out, ref, atol=1e-4, rtol=1e-4), (out, ref)

    # Default tiny-batch path (dense fallback, no custom-call fixed cost).
    out_fb = jax.block_until_ready(
        beta2measurement(part_widths, bone_len, prepared))
    assert jnp.allclose(out_fb, ref, atol=1e-4, rtol=1e-4)

    # Multi-step grid + batch-padding path (B=300 -> 4 steps of 80 rows).
    B2 = 300
    kw2, kb2 = jax.random.split(jax.random.PRNGKey(1))
    pw2 = jax.random.uniform(kw2, (B2, NUM_PARTS), jnp.float32, 0.05, 0.3)
    bl2 = jax.random.uniform(kb2, (B2, NUM_PARTS), jnp.float32, 0.1, 0.5)
    out2 = jax.block_until_ready(beta2measurement(pw2, bl2, prepared))
    ref2 = beta2measurement_ref(pw2, bl2, params)
    assert out2.shape == (B2, OUT_DIM)
    assert jnp.allclose(out2, ref2, atol=1e-4, rtol=1e-4)

    print("KERNEL_OK")
</pallas_src>

<mosaic_0001>
module attributes {stable_mosaic.version = 11 : i64} {
  func.func @_beta2meas_kernel(%arg0: i32, %arg1: memref<8x13xf32, #tpu.memory_space<vmem>>, %arg2: memref<13x128xf32, #tpu.memory_space<vmem>>, %arg3: memref<1x128xf32, #tpu.memory_space<vmem>>, %arg4: memref<128x512xbf16, #tpu.memory_space<vmem>>, %arg5: memref<128x512xbf16, #tpu.memory_space<vmem>>, %arg6: memref<1x512xf32, #tpu.memory_space<vmem>>, %arg7: memref<512x128xbf16, #tpu.memory_space<vmem>>, %arg8: memref<512x128xbf16, #tpu.memory_space<vmem>>, %arg9: memref<1x128xf32, #tpu.memory_space<vmem>>, %arg10: memref<8x3xf32, #tpu.memory_space<vmem>>) attributes {dimension_semantics = [#tpu.dimension_semantics<parallel>], iteration_bounds = array<i64: 1>, scalar_prefetch = 0 : i64, scratch_operands = 0 : i64, tpu.core_type = #tpu.core_type<tc>, window_params = [{transform_indices = @transform_0, window_bounds = array<i64: 8, 13>}, {pipeline_mode = #tpu.pipeline_mode<synchronous>, transform_indices = @transform_1, window_bounds = array<i64: 13, 128>}, {pipeline_mode = #tpu.pipeline_mode<synchronous>, transform_indices = @transform_2, window_bounds = array<i64: 1, 128>}, {pipeline_mode = #tpu.pipeline_mode<synchronous>, transform_indices = @transform_3, window_bounds = array<i64: 128, 512>}, {pipeline_mode = #tpu.pipeline_mode<synchronous>, transform_indices = @transform_4, window_bounds = array<i64: 128, 512>}, {pipeline_mode = #tpu.pipeline_mode<synchronous>, transform_indices = @transform_5, window_bounds = array<i64: 1, 512>}, {pipeline_mode = #tpu.pipeline_mode<synchronous>, transform_indices = @transform_6, window_bounds = array<i64: 512, 128>}, {pipeline_mode = #tpu.pipeline_mode<synchronous>, transform_indices = @transform_7, window_bounds = array<i64: 512, 128>}, {pipeline_mode = #tpu.pipeline_mode<synchronous>, transform_indices = @transform_8, window_bounds = array<i64: 1, 128>}, {transform_indices = @transform_9, window_bounds = array<i64: 8, 3>}]} {
    %c0 = arith.constant 0 : index
    %c0_0 = arith.constant 0 : index
    %0 = vector.load %arg1[%c0, %c0_0] : memref<8x13xf32, #tpu.memory_space<vmem>>, vector<8x13xf32>
    %c0_1 = arith.constant 0 : index
    %c0_2 = arith.constant 0 : index
    %1 = vector.load %arg2[%c0_1, %c0_2] : memref<13x128xf32, #tpu.memory_space<vmem>>, vector<13x128xf32>
    %cst = arith.constant dense<0.000000e+00> : vector<8x128xf32>
    %2 = tpu.matmul %0, %1, %cst {dimension_numbers = #tpu.dot_dimension_numbers<[1], [0], [0], [1], [0, 0, 1, 1], [], []>} : vector<8x13xf32>, vector<13x128xf32>, vector<8x128xf32> -> vector<8x128xf32>
    %c0_3 = arith.constant 0 : index
    %c0_4 = arith.constant 0 : index
    %3 = vector.load %arg3[%c0_3, %c0_4] : memref<1x128xf32, #tpu.memory_space<vmem>>, vector<1x128xf32>
    %4 = vector.shape_cast %3 : vector<1x128xf32> to vector<1x128xf32>
    %5 = vector.broadcast %4 : vector<1x128xf32> to vector<8x128xf32>
    %cst_5 = arith.constant 0.000000e+00 : f32
    %6 = vector.broadcast %cst_5 : f32 to vector<8x128xf32>
    %7 = arith.cmpf ogt, %5, %6 : vector<8x128xf32>
    %8 = math.sin %2 : vector<8x128xf32>
    %9 = arith.select %7, %8, %2 : vector<8x128xi1>, vector<8x128xf32>
    %10 = arith.truncf %9 : vector<8x128xf32> to vector<8x128xbf16>
    %11 = arith.extf %10 : vector<8x128xbf16> to vector<8x128xf32>
    %12 = arith.subf %9, %11 : vector<8x128xf32>
    %13 = arith.truncf %12 : vector<8x128xf32> to vector<8x128xbf16>
    %c0_6 = arith.constant 0 : index
    %c0_7 = arith.constant 0 : index
    %14 = vector.load %arg4[%c0_6, %c0_7] : memref<128x512xbf16, #tpu.memory_space<vmem>>, vector<128x512xbf16>
    %cst_8 = arith.constant dense<0.000000e+00> : vector<8x512xf32>
    %15 = tpu.matmul %10, %14, %cst_8 {dimension_numbers = #tpu.dot_dimension_numbers<[1], [0], [0], [1], [0, 0, 1, 1], [], []>} : vector<8x128xbf16>, vector<128x512xbf16>, vector<8x512xf32> -> vector<8x512xf32>
    %c0_9 = arith.constant 0 : index
    %c0_10 = arith.constant 0 : index
    %16 = vector.load %arg5[%c0_9, %c0_10] : memref<128x512xbf16, #tpu.memory_space<vmem>>, vector<128x512xbf16>
    %cst_11 = arith.constant dense<0.000000e+00> : vector<8x512xf32>
    %17 = tpu.matmul %10, %16, %cst_11 {dimension_numbers = #tpu.dot_dimension_numbers<[1], [0], [0], [1], [0, 0, 1, 1], [], []>} : vector<8x128xbf16>, vector<128x512xbf16>, vector<8x512xf32> -> vector<8x512xf32>
    %18 = arith.addf %15, %17 : vector<8x512xf32>
    %c0_12 = arith.constant 0 : index
    %c0_13 = arith.constant 0 : index
    %19 = vector.load %arg4[%c0_12, %c0_13] : memref<128x512xbf16, #tpu.memory_space<vmem>>, vector<128x512xbf16>
    %cst_14 = arith.constant dense<0.000000e+00> : vector<8x512xf32>
    %20 = tpu.matmul %13, %19, %cst_14 {dimension_numbers = #tpu.dot_dimension_numbers<[1], [0], [0], [1], [0, 0, 1, 1], [], []>} : vector<8x128xbf16>, vector<128x512xbf16>, vector<8x512xf32> -> vector<8x512xf32>
    %21 = arith.addf %18, %20 : vector<8x512xf32>
    %c0_15 = arith.constant 0 : index
    %c0_16 = arith.constant 0 : index
    %22 = vector.load %arg6[%c0_15, %c0_16] : memref<1x512xf32, #tpu.memory_space<vmem>>, vector<1x512xf32>
    %23 = vector.broadcast %22 : vector<1x512xf32> to vector<8x512xf32>
    %24 = arith.addf %21, %23 : vector<8x512xf32>
    %25 = math.tanh %24 : vector<8x512xf32>
    %26 = arith.truncf %25 : vector<8x512xf32> to vector<8x512xbf16>
    %27 = arith.extf %26 : vector<8x512xbf16> to vector<8x512xf32>
    %28 = arith.subf %25, %27 : vector<8x512xf32>
    %29 = arith.truncf %28 : vector<8x512xf32> to vector<8x512xbf16>
    %c0_17 = arith.constant 0 : index
    %c0_18 = arith.constant 0 : index
    %30 = vector.load %arg7[%c0_17, %c0_18] : memref<512x128xbf16, #tpu.memory_space<vmem>>, vector<512x128xbf16>
    %cst_19 = arith.constant dense<0.000000e+00> : vector<8x128xf32>
    %31 = tpu.matmul %26, %30, %cst_19 {dimension_numbers = #tpu.dot_dimension_numbers<[1], [0], [0], [1], [0, 0, 1, 1], [], []>} : vector<8x512xbf16>, vector<512x128xbf16>, vector<8x128xf32> -> vector<8x128xf32>
    %c0_20 = arith.constant 0 : index
    %c0_21 = arith.constant 0 : index
    %32 = vector.load %arg8[%c0_20, %c0_21] : memref<512x128xbf16, #tpu.memory_space<vmem>>, vector<512x128xbf16>
    %cst_22 = arith.constant dense<0.000000e+00> : vector<8x128xf32>
    %33 = tpu.matmul %26, %32, %cst_22 {dimension_numbers = #tpu.dot_dimension_numbers<[1], [0], [0], [1], [0, 0, 1, 1], [], []>} : vector<8x512xbf16>, vector<512x128xbf16>, vector<8x128xf32> -> vector<8x128xf32>
    %34 = arith.addf %31, %33 : vector<8x128xf32>
    %c0_23 = arith.constant 0 : index
    %c0_24 = arith.constant 0 : index
    %35 = vector.load %arg7[%c0_23, %c0_24] : memref<512x128xbf16, #tpu.memory_space<vmem>>, vector<512x128xbf16>
    %cst_25 = arith.constant dense<0.000000e+00> : vector<8x128xf32>
    %36 = tpu.matmul %29, %35, %cst_25 {dimension_numbers = #tpu.dot_dimension_numbers<[1], [0], [0], [1], [0, 0, 1, 1], [], []>} : vector<8x512xbf16>, vector<512x128xbf16>, vector<8x128xf32> -> vector<8x128xf32>
    %37 = arith.addf %34, %36 : vector<8x128xf32>
    %c0_26 = arith.constant 0 : index
    %c0_27 = arith.constant 0 : index
    %38 = vector.load %arg9[%c0_26, %c0_27] : memref<1x128xf32, #tpu.memory_space<vmem>>, vector<1x128xf32>
    %39 = vector.broadcast %38 : vector<1x128xf32> to vector<8x128xf32>
    %40 = arith.addf %37, %39 : vector<8x128xf32>
    %41 = vector.extract_strided_slice %40 {offsets = [0, 0], sizes = [8, 3], strides = [1, 1]} : vector<8x128xf32> to vector<8x3xf32>
    %c0_28 = arith.constant 0 : index
    %c0_29 = arith.constant 0 : index
    %42 = vector.load %arg10[%c0_28, %c0_29] : memref<8x3xf32, #tpu.memory_space<vmem>>, vector<8x3xf32>
    tpu.vector_store %arg10[%c0_28, %c0_29], %41 {strides = array<i32>} : memref<8x3xf32, #tpu.memory_space<vmem>>, vector<8x3xf32>,
    return
  }
  func.func @transform_0(%arg0: i32) -> (i32, i32) {
    %c0_i32 = arith.constant 0 : i32
    %c0_i32_0 = arith.constant 0 : i32
    return %arg0, %c0_i32 : i32, i32
  }
  func.func @transform_1(%arg0: i32) -> (i32, i32) {
    %c0_i32 = arith.constant 0 : i32
    %c0_i32_0 = arith.constant 0 : i32
    %c0_i32_1 = arith.constant 0 : i32
    return %c0_i32, %c0_i32_0 : i32, i32
  }
  func.func @transform_2(%arg0: i32) -> (i32, i32) {
    %c0_i32 = arith.constant 0 : i32
    %c0_i32_0 = arith.constant 0 : i32
    %c0_i32_1 = arith.constant 0 : i32
    return %c0_i32, %c0_i32_0 : i32, i32
  }
  func.func @transform_3(%arg0: i32) -> (i32, i32) {
    %c0_i32 = arith.constant 0 : i32
    %c0_i32_0 = arith.constant 0 : i32
    %c0_i32_1 = arith.constant 0 : i32
    return %c0_i32, %c0_i32_0 : i32, i32
  }
  func.func @transform_4(%arg0: i32) -> (i32, i32) {
    %c0_i32 = arith.constant 0 : i32
    %c0_i32_0 = arith.constant 0 : i32
    %c0_i32_1 = arith.constant 0 : i32
    return %c0_i32, %c0_i32_0 : i32, i32
  }
  func.func @transform_5(%arg0: i32) -> (i32, i32) {
    %c0_i32 = arith.constant 0 : i32
    %c0_i32_0 = arith.constant 0 : i32
    %c0_i32_1 = arith.constant 0 : i32
    return %c0_i32, %c0_i32_0 : i32, i32
  }
  func.func @transform_6(%arg0: i32) -> (i32, i32) {
    %c0_i32 = arith.constant 0 : i32
    %c0_i32_0 = arith.constant 0 : i32
    %c0_i32_1 = arith.constant 0 : i32
    return %c0_i32, %c0_i32_0 : i32, i32
  }
  func.func @transform_7(%arg0: i32) -> (i32, i32) {
    %c0_i32 = arith.constant 0 : i32
    %c0_i32_0 = arith.constant 0 : i32
    %c0_i32_1 = arith.constant 0 : i32
    return %c0_i32, %c0_i32_0 : i32, i32
  }
  func.func @transform_8(%arg0: i32) -> (i32, i32) {
    %c0_i32 = arith.constant 0 : i32
    %c0_i32_0 = arith.constant 0 : i32
    %c0_i32_1 = arith.constant 0 : i32
    return %c0_i32, %c0_i32_0 : i32, i32
  }
  func.func @transform_9(%arg0: i32) -> (i32, i32) {
    %c0_i32 = arith.constant 0 : i32
    %c0_i32_0 = arith.constant 0 : i32
    return %arg0, %c0_i32 : i32, i32
  }
}

</mosaic_0001>

<llo_original>
// kernel: beta2measurement.1
$region0: #{beta2measurement.1}
  #allocation0 [shape = 'u32[]', space=smem, size = 0x4, offset = 0x4, fixed_abs, tag = 'smem constant byte address 0x4 - core index']
  #allocation1 [shape = 'u32[144,128]{1,0:T(1,128)}', space=vmem, size = 0x12000, scoped, tag = 'internal scratch']
  %s0 = inlined_call_operand.vmem [shape: f32[8,13], index: 0, kind: input, shape index: {}]
  %s1 = inlined_call_operand.vmem [shape: f32[13,128], index: 1, kind: input, shape index: {}]
  %s2 = inlined_call_operand.vmem [shape: f32[1,128], index: 2, kind: input, shape index: {}]
  %s3 = inlined_call_operand.hbm [shape: bf16[128,512], index: 3, kind: input, shape index: {}]
  %s4 = inlined_call_operand.hbm [shape: bf16[128,512], index: 4, kind: input, shape index: {}]
  %s5 = inlined_call_operand.vmem [shape: f32[1,512], index: 5, kind: input, shape index: {}]
  %s6 = inlined_call_operand.hbm [shape: bf16[512,128], index: 6, kind: input, shape index: {}]
  %s7 = inlined_call_operand.hbm [shape: bf16[512,128], index: 7, kind: input, shape index: {}]
  %s8 = inlined_call_operand.vmem [shape: f32[1,128], index: 8, kind: input, shape index: {}]
  %s9 = inlined_call_operand.vmem [shape: f32[8,3], index: 9, kind: output, shape index: {}]
  %s10 = sld [smem:[#allocation0]]
  $region62: #{beta2measurement.1} parent=0
    _
  %s12 = ssub.s32 1, %s10
  %s13 = scalar_select 0, %s12, %s10
  $region1: #{beta2measurement.1} parent=0
    #allocation2 [shape = 'u8[131072]{0}', space=vmem, size = 0x20000, scoped, tag = 'input window, operand 3, single buffered']
    #allocation3 [shape = 's32[1]{0}', space=sflag, size = 0x4, scoped, tag = 'scoped memory for beta2measurement.1']
    #allocation4 [shape = 'u8[131072]{0}', space=vmem, size = 0x20000, scoped, tag = 'input window, operand 4, single buffered']
    #allocation5 [shape = 's32[1]{0}', space=sflag, size = 0x4, scoped, tag = 'scoped memory for beta2measurement.1']
    #allocation6 [shape = 'u8[131072]{0}', space=vmem, size = 0x20000, scoped, tag = 'input window, operand 6, single buffered']
    #allocation7 [shape = 'u8[131072]{0}', space=vmem, size = 0x20000, scoped, tag = 'input window, operand 7, single buffered']
    #allocation8 [shape = 's32[1]{0}', space=sflag, size = 0x4, scoped, tag = 'scoped memory for beta2measurement.1']
    %14 = vsyncpa [#allocation3], 0
    %15 = vsyncpa [#allocation5], 0
    %16 = vsyncpa [#allocation8], 0
    // Predicated region
    $region2: #{beta2measurement.1} parent=1 // pred_check
      _
    $region3: #{beta2measurement.1} parent=1 // pred_check_branch
      %18 = sbr.rel (0) target = $region5
    $region4: #{beta2measurement.1} parent=1 // pred_region
      _
    $region5: #{beta2measurement.1} parent=1 // pred_fallthru
      _
    // Predicated region
    $region6: #{beta2measurement.1} parent=1 // pred_check
      _
    $region7: #{beta2measurement.1} parent=1 // pred_check_branch
      %20 = sbr.rel (0) target = $region9
    $region8: #{beta2measurement.1} parent=1 // pred_region
      _
    $region9: #{beta2measurement.1} parent=1 // pred_fallthru
      _
    // Predicated region
    $region10: #{beta2measurement.1} parent=1 // pred_check
      _
    $region11: #{beta2measurement.1} parent=1 // pred_check_branch
      %22 = sbr.rel (0) target = $region13
    $region12: #{beta2measurement.1} parent=1 // pred_region
      _
    $region13: #{beta2measurement.1} parent=1 // pred_fallthru
      _
    // Predicated region
    $region14: #{beta2measurement.1} parent=1 // pred_check
      _
    $region15: #{beta2measurement.1} parent=1 // pred_check_branch
      %24 = sbr.rel (0) target = $region17
    $region16: #{beta2measurement.1} parent=1 // pred_region
      %s26 = ssub.s32 4096, 4096
      %27 = vsyncadd [#allocation3], %s26
      %s28 = sshll.u32 [#allocation2], 4
      %s29 = int_to_ptr.vmem [resolvable:$true] %s28
      %34 = dma.hbm_to_vmem [thread:$0]  %s3, 4096, %s29, [#allocation3], 256, 256, 16
    $region17: #{beta2measurement.1} parent=1 // pred_fallthru
      _
    // Predicated region
    $region18: #{beta2measurement.1} parent=1 // pred_check
      _
    $region19: #{beta2measurement.1} parent=1 // pred_check_branch
      %36 = sbr.rel (0) target = $region21
    $region20: #{beta2measurement.1} parent=1 // pred_region
      %s38 = ssub.s32 4096, 4096
      %39 = vsyncadd [#allocation5], %s38
      %s40 = sshll.u32 [#allocation4], 4
      %s41 = int_to_ptr.vmem [resolvable:$true] %s40
      %46 = dma.hbm_to_vmem [thread:$0]  %s4, 4096, %s41, [#allocation5], 256, 256, 16
    $region21: #{beta2measurement.1} parent=1 // pred_fallthru
      _
    // Predicated region
    $region22: #{beta2measurement.1} parent=1 // pred_check
      _
    $region23: #{beta2measurement.1} parent=1 // pred_check_branch
      %48 = sbr.rel (0) target = $region25
    $region24: #{beta2measurement.1} parent=1 // pred_region
      _
    $region25: #{beta2measurement.1} parent=1 // pred_fallthru
      _
    // Predicated region
    $region26: #{beta2measurement.1} parent=1 // pred_check
      _
    $region27: #{beta2measurement.1} parent=1 // pred_check_branch
      %50 = sbr.rel (0) target = $region29
    $region28: #{beta2measurement.1} parent=1 // pred_region
      %s52 = ssub.s32 4096, 4096
      %53 = vsyncadd [#allocation5], %s52
      %s54 = sshll.u32 [#allocation6], 4
      %s55 = int_to_ptr.vmem [resolvable:$true] %s54
      %60 = dma.hbm_to_vmem [thread:$0]  %s6, 4096, %s55, [#allocation5], 64, 64, 4
    $region29: #{beta2measurement.1} parent=1 // pred_fallthru
      _
    // Predicated region
    $region30: #{beta2measurement.1} parent=1 // pred_check
      _
    $region31: #{beta2measurement.1} parent=1 // pred_check_branch
      %62 = sbr.rel (0) target = $region33
    $region32: #{beta2measurement.1} parent=1 // pred_region
      %s64 = ssub.s32 4096, 4096
      %65 = vsyncadd [#allocation8], %s64
      %s66 = sshll.u32 [#allocation7], 4
      %s67 = int_to_ptr.vmem [resolvable:$true] %s66
      %72 = dma.hbm_to_vmem [thread:$0]  %s7, 4096, %s67, [#allocation8], 64, 64, 4
    $region33: #{beta2measurement.1} parent=1 // pred_fallthru
      _
    // Predicated region
    $region34: #{beta2measurement.1} parent=1 // pred_check
      _
    $region35: #{beta2measurement.1} parent=1 // pred_check_branch
      %74 = sbr.rel (0) target = $region37
    $region36: #{beta2measurement.1} parent=1 // pred_region
      _
    $region37: #{beta2measurement.1} parent=1 // pred_fallthru
      _
    // Predicated region
    $region38: #{beta2measurement.1} parent=1 // pred_check
      _
    $region39: #{beta2measurement.1} parent=1 // pred_check_branch
      %76 = sbr.rel (0) target = $region41
    $region40: #{beta2measurement.1} parent=1 // pred_region
      %77 = dma.done [#allocation3], 4096
    $region41: #{beta2measurement.1} parent=1 // pred_fallthru
      _
    // Predicated region
    $region42: #{beta2measurement.1} parent=1 // pred_check
      _
    $region43: #{beta2measurement.1} parent=1 // pred_check_branch
      %79 = sbr.rel (0) target = $region45
    $region44: #{beta2measurement.1} parent=1 // pred_region
      %80 = dma.done [#allocation5], 4096
    $region45: #{beta2measurement.1} parent=1 // pred_fallthru
      _
    // Predicated region
    $region46: #{beta2measurement.1} parent=1 // pred_check
      _
    $region47: #{beta2measurement.1} parent=1 // pred_check_branch
      %82 = sbr.rel (0) target = $region49
    $region48: #{beta2measurement.1} parent=1 // pred_region
      %83 = dma.done [#allocation5], 4096
    $region49: #{beta2measurement.1} parent=1 // pred_fallthru
      _
    // Predicated region
    $region50: #{beta2measurement.1} parent=1 // pred_check
      _
    $region51: #{beta2measurement.1} parent=1 // pred_check_branch
      %85 = sbr.rel (0) target = $region53
    $region52: #{beta2measurement.1} parent=1 // pred_region
      %86 = dma.done [#allocation8], 4096
    $region53: #{beta2measurement.1} parent=1 // pred_fallthru
      _
    %v88 = vld [vmem:[%s0] sm:$0xff]
    %v89 = vld [vmem:[%s1] sm:$0xff]
    %v90 = vld [vmem:[%s1 + $0x8] sm:$0x1f]
    %vm91 = vcmask 105472
    %v93 = vsel %vm91, %v88, 0
    %vm95 = vcmask 1044480
    %v97 = vsel %vm95, %v90, 0
    %99 = vmatprep.subr.mxu0 0.0
    %100 = vmatpush1.msra.mxu0 0.0
    %101 = vmatprep.subr.mxu0 0.0
    %102 = vmatpush1.msra.mxu0 0.0
    %103 = vmatprep.subr.mxu0 0.0
    %104 = vmatpush1.msra.mxu0 0.0
    %105 = vmatprep.subr.mxu0 0.0
    %106 = vmatpush1.msra.mxu0 0.0
    %107 = vmatprep.subr.mxu0 0.0
    %108 = vmatpush1.msra.mxu0 0.0
    %109 = vmatprep.subr.mxu0 0.0
    %110 = vmatpush1.msra.mxu0 0.0
    %111 = vmatprep.subr.mxu0 0.0
    %112 = vmatpush1.msra.mxu0 0.0
    %113 = vmatprep.subr.mxu0 0.0
    %114 = vmatpush1.msra.mxu0 0.0
    %115 = vmatprep.subr.mxu0 0.0
    %116 = vmatpush1.msra.mxu0 0.0
    %117 = vmatprep.subr.mxu0 0.0
    %118 = vmatpush1.msra.mxu0 0.0
    %119 = vmatprep.subr.mxu0 0.0
    %120 = vmatpush1.msra.mxu0 0.0
    %121 = vmatprep.subr.mxu0 0.0
    %122 = vmatpush1.msra.mxu0 0.0
    %123 = vmatprep.subr.mxu0 0.0
    %124 = vmatpush1.msra.mxu0 0.0
    %125 = vmatprep.subr.mxu0 0.0
    %126 = vmatpush1.msra.mxu0 0.0
    %127 = vmatprep.subr.mxu0 0.0
    %128 = vmatpush1.msra.mxu0 %v97
    %129 = vmatprep.subr.mxu0 0.0
    %130 = vmatpush1.msra.mxu0 %v89
    %131 = vmatprep.subr.mxu0 0.0
    %132 = vmatpush2.msra.mxu0 0.0
    %133 = vmatprep.subr.mxu0 0.0
    %134 = vmatpush2.msra.mxu0 0.0
    %135 = vmatprep.subr.mxu0 0.0
    %136 = vmatpush2.msra.mxu0 0.0
    %137 = vmatprep.subr.mxu0 0.0
    %138 = vmatpush2.msra.mxu0 0.0
    %139 = vmatprep.subr.mxu0 0.0
    %140 = vmatpush2.msra.mxu0 0.0
    %141 = vmatprep.subr.mxu0 0.0
    %142 = vmatpush2.msra.mxu0 0.0
    %143 = vmatprep.subr.mxu0 0.0
    %144 = vmatpush2.msra.mxu0 0.0
    %145 = vmatprep.subr.mxu0 0.0
    %146 = vmatpush2.msra.mxu0 0.0
    %147 = vmatprep.subr.mxu0 0.0
    %148 = vmatpush2.msra.mxu0 0.0
    %149 = vmatprep.subr.mxu0 0.0
    %150 = vmatpush2.msra.mxu0 0.0
    %151 = vmatprep.subr.mxu0 0.0
    %152 = vmatpush2.msra.mxu0 0.0
    %153 = vmatprep.subr.mxu0 0.0
    %154 = vmatpush2.msra.mxu0 0.0
    %155 = vmatprep.subr.mxu0 0.0
    %156 = vmatpush2.msra.mxu0 0.0
    %157 = vmatprep.subr.mxu0 0.0
    %158 = vmatpush2.msra.mxu0 0.0
    %159 = vmatprep.subr.mxu0 0.0
    %160 = vmatpush2.msra.mxu0 0.0
    %161 = vmatprep.subr.mxu0 0.0
    %162 = vmatpush2.msra.mxu0 0.0
    %163 = vmatprep.mubr.f32.mxu0 0.0
    %164 = vmatmul.mubr.f32.gmra.mxu0 %v93
    %v165 = vpop.f32.mrf.mxu0
    %v166 = vadd.f32 0.0, %v165
    %v167 = vpop.f32.mrf.mxu0
    %168 = vdwg.mxu0
    %v169 = vld [vmem:[%s2] sm:$0x1]
    %v171 = vlaneseq
    %v172 = vshrl.u32 %v171, 7
    %v173 = vsub.s32 0, %v172
    %v174 = vrot.slane %v169, %v173
    %vm176 = vcmp.gt.f32.partialorder %v174, 0.0
    %v177 = vand.u32 2147483647, %v166
    %vm178 = vcmp.le.f32.partialorder %v177, 0.7853982
    %vm179 = vcmp.lt.s32.totalorder %v166, 0
    %v180 = vand.u32 %v166, 2139095040
    %v181 = vshrl.u32 %v180, 23
    %v182 = vsub.s32 %v181, 127
    %v183 = vand.u32 2147483647, %v166
    %v184 = vand.u32 %v183, 8388607
    %v185 = vor.u32 %v184, 8388608
    %v186 = vsub.s32 0, %v185
    %v187 = vadd.s32 %v182, 1
    %vm188 = vcmp.gt.s32.totalorder %v187, 0
    %v189 = vsel %vm188, %v187, 0
    %v190 = vshrl.u32 %v189, 5
    %v191 = vand.u32 %v189, 31
    %v192 = vsub.s32 32, %v191
    %v193 = vshrl.u32 683565275, %v192
    %v194 = vshll.u32 683565275, %v191
    %v195 = vshrl.u32 2475754826, %v192
    %v196 = vor.u32 %v194, %v195
    %v197 = vshll.u32 2475754826, %v191
    %v198 = vshrl.u32 2131351028, %v192
    %v199 = vor.u32 %v197, %v198
    %v200 = vshll.u32 2131351028, %v191
    %v201 = vshrl.u32 2102212464, %v192
    %v202 = vor.u32 %v200, %v201
    %v203 = vshll.u32 2102212464, %v191
    %v204 = vshrl.u32 920167782, %v192
    %v205 = vor.u32 %v203, %v204
    %v206 = vshll.u32 920167782, %v191
    %v207 = vshrl.u32 1326507024, %v192
    %v208 = vor.u32 %v206, %v207
    %vm209 = vcmp.lt.s32.totalorder %v190, 1
    %vm210 = vcmp.lt.s32.totalorder %v190, 2
    %vm211 = vcmp.lt.s32.totalorder %v190, 3
    %vm212 = vcmp.lt.s32.totalorder %v190, 4
    %v213 = vsel %vm209, %v193, %v196
    %v214 = vsel %vm212, %v202, 2102212464
    %v215 = vsel %vm211, %v199, %v214
    %v216 = vsel %vm210, %v213, %v215
    %v217 = vsel %vm209, %v196, %v199
    %v218 = vsel %vm212, %v205, 920167782
    %v219 = vsel %vm211, %v202, %v218
    %v220 = vsel %vm210, %v217, %v219
    %v221 = vsel %vm209, %v199, %v202
    %v222 = vsel %vm212, %v208, 1326507024
    %v223 = vsel %vm211, %v205, %v222
    %v224 = vsel %vm210, %v221, %v223
    %v225 = vshll.u32 %v185, 8
    %v226 = vmul.u32.u64.compose %v225, %v224
    %v227 = vextract.low.u32 %v226
    %v228 = vextract.high.u32 %v226
    %v229 = vmul.u32.u64.compose %v225, %v220
    %v230 = vextract.low.u32 %v229
    %v231 = vextract.high.u32 %v229
    %v232 = vmul.u32 %v225, %v216
    %v233 = vadd.s32 %v228, %v230
    %vm234 = vc.u32 %v228, %v230
    %v235 = vadd.s32 %v231, 1
    %v236 = vsel %vm234, %v235, %v231
    %v237 = vadd.s32 %v232, %v236
    %v238 = vadd.s32 %v237, 536870912
    %v239 = vshrl.u32 %v238, 30
    %v240 = vshll.u32 %v239, 30
    %v241 = vsub.s32 %v237, %v240
    %vm242 = vcmp.lt.s32.totalorder %v241, 0
    %v243 = vsub.s32 0, %v241
    %v244 = vsel %vm242, %v243, %v241
    %v245 = vclz %v244
    %v246 = vsub.s32 %v245, 2
    %vm247 = vcmp.gt.s32.totalorder 0, %v246
    %v248 = vsel %vm247, 0, %v246
    %v249 = vsub.s32 32, %v248
    %v250 = vshll.u32 %v241, %v248
    %v251 = vshrl.u32 %v233, %v249
    %v252 = vor.u32 %v250, %v251
    %v253 = vsub.s32 4294967266, %v248
    %v254 = vadd.s32 %v253, 127
    %v255 = vshll.u32 %v254, 23
    %v256 = vor.u32 4788187, %v255
    %v257 = vand.u32 2147483647, %v256
    %v259 = vcvt.s32.f32 %v252
    %v260 = vmul.f32 %v259, %v257
    %v261 = vxor.u32 %v260, 2147483648
    %v262 = vsel %vm179, %v261, %v260
    %v263 = vsub.s32 4, %v239
    %v264 = vsel %vm179, %v263, %v239
    %v265 = vsel %vm178, %v166, %v262
    %v266 = vsel %vm178, 0, %v264
    %v267 = vcosq.f32.pop %v265
    %v268 = vsinq.f32.pop %v265
    %vm269 = vweird.f32 %v166
    %v270 = vadd.s32 %v266, 3
    %v271 = vand.u32 %v270, 3
    %vm272 = vcmp.lt.s32.totalorder %v271, 2
    %vm273 = vcmp.eq.s32.totalorder %v271, 0
    %v274 = vxor.u32 %v268, 2147483648
    %v275 = vsel %vm273, %v267, %v274
    %vm276 = vcmp.eq.s32.totalorder %v271, 2
    %v277 = vxor.u32 %v267, 2147483648
    %v278 = vsel %vm276, %v277, %v268
    %v279 = vsel %vm272, %v275, %v278
    %v280 = vsel %vm269, nan, %v279
    %v281 = vsel %vm176, %v280, %v166
    %v282 = vpack.c.bf16 %v281, %v281
    %v283 = vunpack.c.l.bf16 %v282
    %v284 = vsub.f32 %v281, %v283
    %v285 = vpack.c.bf16 %v284, %v284
    %v286 = vld [vmem:[#allocation2] sm:$0xff]
    %v287 = vld [vmem:[#allocation2 + $0x8] sm:$0xff]
    %v288 = vld [vmem:[#allocation2 + $0x10] sm:$0xff]
    %v289 = vld [vmem:[#allocation2 + $0x18] sm:$0xff]
    %v290 = vld [vmem:[#allocation2 + $0x20] sm:$0xff]
    %v291 = vld [vmem:[#allocation2 + $0x28] sm:$0xff]
    %v292 = vld [vmem:[#allocation2 + $0x30] sm:$0xff]
    %v293 = vld [vmem:[#allocation2 + $0x38] sm:$0xff]
    %v294 = vld [vmem:[#allocation2 + $0x40] sm:$0xff]
    %v295 = vld [vmem:[#allocation2 + $0x48] sm:$0xff]
    %v296 = vld [vmem:[#allocation2 + $0x50] sm:$0xff]
    %v297 = vld [vmem:[#allocation2 + $0x58] sm:$0xff]
    %v298 = vld [vmem:[#allocation2 + $0x60] sm:$0xff]
    %v299 = vld [vmem:[#allocation2 + $0x68] sm:$0xff]
    %v300 = vld [vmem:[#allocation2 + $0x70] sm:$0xff]
    %v301 = vld [vmem:[#allocation2 + $0x78] sm:$0xff]
    %v302 = vld [vmem:[#allocation2 + $0x80] sm:$0xff]
    %v303 = vld [vmem:[#allocation2 + $0x88] sm:$0xff]
    %v304 = vld [vmem:[#allocation2 + $0x90] sm:$0xff]
    %v305 = vld [vmem:[#allocation2 + $0x98] sm:$0xff]
    %v306 = vld [vmem:[#allocation2 + $0xa0] sm:$0xff]
    %v307 = vld [vmem:[#allocation2 + $0xa8] sm:$0xff]
    %v308 = vld [vmem:[#allocation2 + $0xb0] sm:$0xff]
    %v309 = vld [vmem:[#allocation2 + $0xb8] sm:$0xff]
    %v310 = vld [vmem:[#allocation2 + $0xc0] sm:$0xff]
    %v311 = vld [vmem:[#allocation2 + $0xc8] sm:$0xff]
    %v312 = vld [vmem:[#allocation2 + $0xd0] sm:$0xff]
    %v313 = vld [vmem:[#allocation2 + $0xd8] sm:$0xff]
    %v314 = vld [vmem:[#allocation2 + $0xe0] sm:$0xff]
    %v315 = vld [vmem:[#allocation2 + $0xe8] sm:$0xff]
    %v316 = vld [vmem:[#allocation2 + $0xf0] sm:$0xff]
    %v317 = vld [vmem:[#allocation2 + $0xf8] sm:$0xff]
    %v318 = vld [vmem:[#allocation4] sm:$0xff]
    %v319 = vld [vmem:[#allocation4 + $0x8] sm:$0xff]
    %v320 = vld [vmem:[#allocation4 + $0x10] sm:$0xff]
    %v321 = vld [vmem:[#allocation4 + $0x18] sm:$0xff]
    %v322 = vld [vmem:[#allocation4 + $0x20] sm:$0xff]
    %v323 = vld [vmem:[#allocation4 + $0x28] sm:$0xff]
    %v324 = vld [vmem:[#allocation4 + $0x30] sm:$0xff]
    %v325 = vld [vmem:[#allocation4 + $0x38] sm:$0xff]
    %v326 = vld [vmem:[#allocation4 + $0x40] sm:$0xff]
    %v327 = vld [vmem:[#allocation4 + $0x48] sm:$0xff]
    %v328 = vld [vmem:[#allocation4 + $0x50] sm:$0xff]
    %v329 = vld [vmem:[#allocation4 + $0x58] sm:$0xff]
    %v330 = vld [vmem:[#allocation4 + $0x60] sm:$0xff]
    %v331 = vld [vmem:[#allocation4 + $0x68] sm:$0xff]
    %v332 = vld [vmem:[#allocation4 + $0x70] sm:$0xff]
    %v333 = vld [vmem:[#allocation4 + $0x78] sm:$0xff]
    %v334 = vld [vmem:[#allocation4 + $0x80] sm:$0xff]
    %v335 = vld [vmem:[#allocation4 + $0x88] sm:$0xff]
    %v336 = vld [vmem:[#allocation4 + $0x90] sm:$0xff]
    %v337 = vld [vmem:[#allocation4 + $0x98] sm:$0xff]
    %v338 = vld [vmem:[#allocation4 + $0xa0] sm:$0xff]
    %v339 = vld [vmem:[#allocation4 + $0xa8] sm:$0xff]
    %v340 = vld [vmem:[#allocation4 + $0xb0] sm:$0xff]
    %v341 = vld [vmem:[#allocation4 + $0xb8] sm:$0xff]
    %v342 = vld [vmem:[#allocation4 + $0xc0] sm:$0xff]
    %v343 = vld [vmem:[#allocation4 + $0xc8] sm:$0xff]
    %v344 = vld [vmem:[#allocation4 + $0xd0] sm:$0xff]
    %v345 = vld [vmem:[#allocation4 + $0xd8] sm:$0xff]
    %v346 = vld [vmem:[#allocation4 + $0xe0] sm:$0xff]
    %v347 = vld [vmem:[#allocation4 + $0xe8] sm:$0xff]
    %v348 = vld [vmem:[#allocation4 + $0xf0] sm:$0xff]
    %v349 = vld [vmem:[#allocation4 + $0xf8] sm:$0xff]
    %v382 = vunpack.c.l.b16 %v318
    %v383 = vunpack.c.h.b16 %v318
    %v384 = vunpack.c.l.b16 %v319
    %v385 = vunpack.c.h.b16 %v319
    %v386 = vunpack.c.l.b16 %v320
    %v387 = vunpack.c.h.b16 %v320
    %v388 = vunpack.c.l.b16 %v321
    %v389 = vunpack.c.h.b16 %v321
    %v390 = vunpack.c.l.b16 %v322
    %v391 = vunpack.c.h.b16 %v322
    %v392 = vunpack.c.l.b16 %v323
    %v393 = vunpack.c.h.b16 %v323
    %v394 = vunpack.c.l.b16 %v324
    %v395 = vunpack.c.h.b16 %v324
    %v396 = vunpack.c.l.b16 %v325
    %v397 = vunpack.c.h.b16 %v325
    %v398 = vunpack.c.l.b16 %v326
    %v399 = vunpack.c.h.b16 %v326
    %v400 = vunpack.c.l.b16 %v327
    %v401 = vunpack.c.h.b16 %v327
    %v402 = vunpack.c.l.b16 %v328
    %v403 = vunpack.c.h.b16 %v328
    %v404 = vunpack.c.l.b16 %v329
    %v405 = vunpack.c.h.b16 %v329
    %v406 = vunpack.c.l.b16 %v330
    %v407 = vunpack.c.h.b16 %v330
    %v408 = vunpack.c.l.b16 %v331
    %v409 = vunpack.c.h.b16 %v331
    %v410 = vunpack.c.l.b16 %v332
    %v411 = vunpack.c.h.b16 %v332
    %v412 = vunpack.c.l.b16 %v333
    %v413 = vunpack.c.h.b16 %v333
    %v414 = vunpack.c.l.b16 %v334
    %v415 = vunpack.c.h.b16 %v334
    %v416 = vunpack.c.l.b16 %v335
    %v417 = vunpack.c.h.b16 %v335
    %v418 = vunpack.c.l.b16 %v336
    %v419 = vunpack.c.h.b16 %v336
    %v420 = vunpack.c.l.b16 %v337
    %v421 = vunpack.c.h.b16 %v337
    %v422 = vunpack.c.l.b16 %v338
    %v423 = vunpack.c.h.b16 %v338
    %v424 = vunpack.c.l.b16 %v339
    %v425 = vunpack.c.h.b16 %v339
    %v426 = vunpack.c.l.b16 %v340
    %v427 = vunpack.c.h.b16 %v340
    %v428 = vunpack.c.l.b16 %v341
    %v429 = vunpack.c.h.b16 %v341
    %v430 = vunpack.c.l.b16 %v342
    %v431 = vunpack.c.h.b16 %v342
    %v432 = vunpack.c.l.b16 %v343
    %v433 = vunpack.c.h.b16 %v343
    %v434 = vunpack.c.l.b16 %v344
    %v435 = vunpack.c.h.b16 %v344
    %v436 = vunpack.c.l.b16 %v345
    %v437 = vunpack.c.h.b16 %v345
    %v438 = vunpack.c.l.b16 %v346
    %v439 = vunpack.c.h.b16 %v346
    %v440 = vunpack.c.l.b16 %v347
    %v441 = vunpack.c.h.b16 %v347
    %v442 = vunpack.c.l.b16 %v348
    %v443 = vunpack.c.h.b16 %v348
    %v444 = vunpack.c.l.b16 %v349
    %v445 = vunpack.c.h.b16 %v349
    %v446 = vpack.c.b16 %v386, %v382
    %v447 = vpack.c.b16 %v387, %v383
    %v448 = vpack.c.b16 %v388, %v384
    %v449 = vpack.c.b16 %v389, %v385
    %v450 = vpack.c.b16 %v394, %v390
    %v451 = vpack.c.b16 %v395, %v391
    %v452 = vpack.c.b16 %v396, %v392
    %v453 = vpack.c.b16 %v397, %v393
    %v454 = vpack.c.b16 %v402, %v398
    %v455 = vpack.c.b16 %v403, %v399
    %v456 = vpack.c.b16 %v404, %v400
    %v457 = vpack.c.b16 %v405, %v401
    %v458 = vpack.c.b16 %v410, %v406
    %v459 = vpack.c.b16 %v411, %v407
    %v460 = vpack.c.b16 %v412, %v408
    %v461 = vpack.c.b16 %v413, %v409
    %v462 = vpack.c.b16 %v418, %v414
    %v463 = vpack.c.b16 %v419, %v415
    %v464 = vpack.c.b16 %v420, %v416
    %v465 = vpack.c.b16 %v421, %v417
    %v466 = vpack.c.b16 %v426, %v422
    %v467 = vpack.c.b16 %v427, %v423
    %v468 = vpack.c.b16 %v428, %v424
    %v469 = vpack.c.b16 %v429, %v425
    %v470 = vpack.c.b16 %v434, %v430
    %v471 = vpack.c.b16 %v435, %v431
    %v472 = vpack.c.b16 %v436, %v432
    %v473 = vpack.c.b16 %v437, %v433
    %v474 = vpack.c.b16 %v442, %v438
    %v475 = vpack.c.b16 %v443, %v439
    %v476 = vpack.c.b16 %v444, %v440
    %v477 = vpack.c.b16 %v445, %v441
    %510 = vmatprep.subr.bf16.mxu0 %v475
    %511 = vmatpush1.bf16.msra.mxu0 %v474
    %512 = vmatprep.subr.bf16.mxu0 %v471
    %513 = vmatpush1.bf16.msra.mxu0 %v470
    %514 = vmatprep.subr.bf16.mxu0 %v467
    %515 = vmatpush1.bf16.msra.mxu0 %v466
    %516 = vmatprep.subr.bf16.mxu0 %v463
    %517 = vmatpush1.bf16.msra.mxu0 %v462
    %518 = vmatprep.subr.bf16.mxu0 %v459
    %519 = vmatpush1.bf16.msra.mxu0 %v458
    %520 = vmatprep.subr.bf16.mxu0 %v455
    %521 = vmatpush1.bf16.msra.mxu0 %v454
    %522 = vmatprep.subr.bf16.mxu0 %v451
    %523 = vmatpush1.bf16.msra.mxu0 %v450
    %524 = vmatprep.subr.bf16.mxu0 %v447
    %525 = vmatpush1.bf16.msra.mxu0 %v446
    %526 = vmatprep.subr.bf16.mxu0 0
    %527 = vmatpush2.bf16.msra.mxu0 0
    %528 = vmatprep.subr.bf16.mxu0 0
    %529 = vmatpush2.bf16.msra.mxu0 0
    %530 = vmatprep.subr.bf16.mxu0 0
    %531 = vmatpush2.bf16.msra.mxu0 0
    %532 = vmatprep.subr.bf16.mxu0 0
    %533 = vmatpush2.bf16.msra.mxu0 0
    %534 = vmatprep.subr.bf16.mxu0 0
    %535 = vmatpush2.bf16.msra.mxu0 0
    %536 = vmatprep.subr.bf16.mxu0 0
    %537 = vmatpush2.bf16.msra.mxu0 0
    %538 = vmatprep.subr.bf16.mxu0 0
    %539 = vmatpush2.bf16.msra.mxu0 0
    %540 = vmatprep.subr.bf16.mxu0 0
    %541 = vmatpush2.bf16.msra.mxu0 0
    %542 = vmatprep.mubr.bf16.mxu0 0
    %543 = vmatmul.mubr.bf16.gmra.mxu0 %v282
    %v544 = vpop.f32.mrf.mxu0
    %v545 = vadd.f32 0.0, %v544
    %v546 = vpop.f32.mrf.mxu0
    %v547 = vadd.f32 0.0, %v546
    %v548 = vpop.f32.mrf.mxu0
    %v549 = vpop.f32.mrf.mxu0
    %550 = vdwg.mxu0
    %551 = vmatprep.subr.bf16.mxu0 %v477
    %552 = vmatpush1.bf16.msra.mxu0 %v476
    %553 = vmatprep.subr.bf16.mxu0 %v473
    %554 = vmatpush1.bf16.msra.mxu0 %v472
    %555 = vmatprep.subr.bf16.mxu0 %v469
    %556 = vmatpush1.bf16.msra.mxu0 %v468
    %557 = vmatprep.subr.bf16.mxu0 %v465
    %558 = vmatpush1.bf16.msra.mxu0 %v464
    %559 = vmatprep.subr.bf16.mxu0 %v461
    %560 = vmatpush1.bf16.msra.mxu0 %v460
    %561 = vmatprep.subr.bf16.mxu0 %v457
    %562 = vmatpush1.bf16.msra.mxu0 %v456
    %563 = vmatprep.subr.bf16.mxu0 %v453
    %564 = vmatpush1.bf16.msra.mxu0 %v452
    %565 = vmatprep.subr.bf16.mxu0 %v449
    %566 = vmatpush1.bf16.msra.mxu0 %v448
    %567 = vmatprep.subr.bf16.mxu0 0
    %568 = vmatpush2.bf16.msra.mxu0 0
    %569 = vmatprep.subr.bf16.mxu0 0
    %570 = vmatpush2.bf16.msra.mxu0 0
    %571 = vmatprep.subr.bf16.mxu0 0
    %572 = vmatpush2.bf16.msra.mxu0 0
    %573 = vmatprep.subr.bf16.mxu0 0
    %574 = vmatpush2.bf16.msra.mxu0 0
    %575 = vmatprep.subr.bf16.mxu0 0
    %576 = vmatpush2.bf16.msra.mxu0 0
    %577 = vmatprep.subr.bf16.mxu0 0
    %578 = vmatpush2.bf16.msra.mxu0 0
    %579 = vmatprep.subr.bf16.mxu0 0
    %580 = vmatpush2.bf16.msra.mxu0 0
    %581 = vmatprep.subr.bf16.mxu0 0
    %582 = vmatpush2.bf16.msra.mxu0 0
    %583 = vmatprep.mubr.bf16.mxu0 0
    %584 = vmatmul.mubr.bf16.gmra.mxu0 %v282
    %v585 = vpop.f32.mrf.mxu0
    %v586 = vadd.f32 0.0, %v585
    %v587 = vpop.f32.mrf.mxu0
    %v588 = vadd.f32 0.0, %v587
    %v589 = vpop.f32.mrf.mxu0
    %v590 = vpop.f32.mrf.mxu0
    %591 = vdwg.mxu0
    %v624 = vunpack.c.l.b16 %v286
    %v625 = vunpack.c.h.b16 %v286
    %v626 = vunpack.c.l.b16 %v287
    %v627 = vunpack.c.h.b16 %v287
    %v628 = vunpack.c.l.b16 %v288
    %v629 = vunpack.c.h.b16 %v288
    %v630 = vunpack.c.l.b16 %v289
    %v631 = vunpack.c.h.b16 %v289
    %v632 = vunpack.c.l.b16 %v290
    %v633 = vunpack.c.h.b16 %v290
    %v634 = vunpack.c.l.b16 %v291
    %v635 = vunpack.c.h.b16 %v291
    %v636 = vunpack.c.l.b16 %v292
    %v637 = vunpack.c.h.b16 %v292
    %v638 = vunpack.c.l.b16 %v293
    %v639 = vunpack.c.h.b16 %v293
    %v640 = vunpack.c.l.b16 %v294
    %v641 = vunpack.c.h.b16 %v294
    %v642 = vunpack.c.l.b16 %v295
    %v643 = vunpack.c.h.b16 %v295
    %v644 = vunpack.c.l.b16 %v296
    %v645 = vunpack.c.h.b16 %v296
    %v646 = vunpack.c.l.b16 %v297
    %v647 = vunpack.c.h.b16 %v297
    %v648 = vunpack.c.l.b16 %v298
    %v649 = vunpack.c.h.b16 %v298
    %v650 = vunpack.c.l.b16 %v299
    %v651 = vunpack.c.h.b16 %v299
    %v652 = vunpack.c.l.b16 %v300
    %v653 = vunpack.c.h.b16 %v300
    %v654 = vunpack.c.l.b16 %v301
    %v655 = vunpack.c.h.b16 %v301
    %v656 = vunpack.c.l.b16 %v302
    %v657 = vunpack.c.h.b16 %v302
    %v658 = vunpack.c.l.b16 %v303
    %v659 = vunpack.c.h.b16 %v303
    %v660 = vunpack.c.l.b16 %v304
    %v661 = vunpack.c.h.b16 %v304
    %v662 = vunpack.c.l.b16 %v305
    %v663 = vunpack.c.h.b16 %v305
    %v664 = vunpack.c.l.b16 %v306
    %v665 = vunpack.c.h.b16 %v306
    %v666 = vunpack.c.l.b16 %v307
    %v667 = vunpack.c.h.b16 %v307
    %v668 = vunpack.c.l.b16 %v308
    %v669 = vunpack.c.h.b16 %v308
    %v670 = vunpack.c.l.b16 %v309
    %v671 = vunpack.c.h.b16 %v309
    %v672 = vunpack.c.l.b16 %v310
    %v673 = vunpack.c.h.b16 %v310
    %v674 = vunpack.c.l.b16 %v311
    %v675 = vunpack.c.h.b16 %v311
    %v676 = vunpack.c.l.b16 %v312
    %v677 = vunpack.c.h.b16 %v312
    %v678 = vunpack.c.l.b16 %v313
    %v679 = vunpack.c.h.b16 %v313
    %v680 = vunpack.c.l.b16 %v314
    %v681 = vunpack.c.h.b16 %v314
    %v682 = vunpack.c.l.b16 %v315
    %v683 = vunpack.c.h.b16 %v315
    %v684 = vunpack.c.l.b16 %v316
    %v685 = vunpack.c.h.b16 %v316
    %v686 = vunpack.c.l.b16 %v317
    %v687 = vunpack.c.h.b16 %v317
    %v688 = vpack.c.b16 %v628, %v624
    %v689 = vpack.c.b16 %v629, %v625
    %v690 = vpack.c.b16 %v630, %v626
    %v691 = vpack.c.b16 %v631, %v627
    %v692 = vpack.c.b16 %v636, %v632
    %v693 = vpack.c.b16 %v637, %v633
    %v694 = vpack.c.b16 %v638, %v634
    %v695 = vpack.c.b16 %v639, %v635
    %v696 = vpack.c.b16 %v644, %v640
    %v697 = vpack.c.b16 %v645, %v641
    %v698 = vpack.c.b16 %v646, %v642
    %v699 = vpack.c.b16 %v647, %v643
    %v700 = vpack.c.b16 %v652, %v648
    %v701 = vpack.c.b16 %v653, %v649
    %v702 = vpack.c.b16 %v654, %v650
    %v703 = vpack.c.b16 %v655, %v651
    %v704 = vpack.c.b16 %v660, %v656
    %v705 = vpack.c.b16 %v661, %v657
    %v706 = vpack.c.b16 %v662, %v658
    %v707 = vpack.c.b16 %v663, %v659
    %v708 = vpack.c.b16 %v668, %v664
    %v709 = vpack.c.b16 %v669, %v665
    %v710 = vpack.c.b16 %v670, %v666
    %v711 = vpack.c.b16 %v671, %v667
    %v712 = vpack.c.b16 %v676, %v672
    %v713 = vpack.c.b16 %v677, %v673
    %v714 = vpack.c.b16 %v678, %v674
    %v715 = vpack.c.b16 %v679, %v675
    %v716 = vpack.c.b16 %v684, %v680
    %v717 = vpack.c.b16 %v685, %v681
    %v718 = vpack.c.b16 %v686, %v682
    %v719 = vpack.c.b16 %v687, %v683
    %752 = vmatprep.subr.bf16.mxu0 %v717
    %753 = vmatpush1.bf16.msra.mxu0 %v716
    %754 = vmatprep.subr.bf16.mxu0 %v713
    %755 = vmatpush1.bf16.msra.mxu0 %v712
    %756 = vmatprep.subr.bf16.mxu0 %v709
    %757 = vmatpush1.bf16.msra.mxu0 %v708
    %758 = vmatprep.subr.bf16.mxu0 %v705
    %759 = vmatpush1.bf16.msra.mxu0 %v704
    %760 = vmatprep.subr.bf16.mxu0 %v701
    %761 = vmatpush1.bf16.msra.mxu0 %v700
    %762 = vmatprep.subr.bf16.mxu0 %v697
    %763 = vmatpush1.bf16.msra.mxu0 %v696
    %764 = vmatprep.subr.bf16.mxu0 %v693
    %765 = vmatpush1.bf16.msra.mxu0 %v692
    %766 = vmatprep.subr.bf16.mxu0 %v689
    %767 = vmatpush1.bf16.msra.mxu0 %v688
    %768 = vmatprep.subr.bf16.mxu0 0
    %769 = vmatpush2.bf16.msra.mxu0 0
    %770 = vmatprep.subr.bf16.mxu0 0
    %771 = vmatpush2.bf16.msra.mxu0 0
    %772 = vmatprep.subr.bf16.mxu0 0
    %773 = vmatpush2.bf16.msra.mxu0 0
    %774 = vmatprep.subr.bf16.mxu0 0
    %775 = vmatpush2.bf16.msra.mxu0 0
    %776 = vmatprep.subr.bf16.mxu0 0
    %777 = vmatpush2.bf16.msra.mxu0 0
    %778 = vmatprep.subr.bf16.mxu0 0
    %779 = vmatpush2.bf16.msra.mxu0 0
    %780 = vmatprep.subr.bf16.mxu0 0
    %781 = vmatpush2.bf16.msra.mxu0 0
    %782 = vmatprep.subr.bf16.mxu0 0
    %783 = vmatpush2.bf16.msra.mxu0 0
    %784 = vmatprep.mubr.bf16.mxu0 0
    %785 = vmatmul.mubr.bf16.gmra.mxu0 %v282
    %v786 = vpop.f32.mrf.mxu0
    %v787 = vadd.f32 %v545, %v786
    %v788 = vpop.f32.mrf.mxu0
    %v789 = vadd.f32 %v547, %v788
    %v790 = vpop.f32.mrf.mxu0
    %v791 = vpop.f32.mrf.mxu0
    %792 = vdwg.mxu0
    %793 = vmatprep.subr.bf16.mxu0 %v719
    %794 = vmatpush1.bf16.msra.mxu0 %v718
    %795 = vmatprep.subr.bf16.mxu0 %v715
    %796 = vmatpush1.bf16.msra.mxu0 %v714
    %797 = vmatprep.subr.bf16.mxu0 %v711
    %798 = vmatpush1.bf16.msra.mxu0 %v710
    %799 = vmatprep.subr.bf16.mxu0 %v707
    %800 = vmatpush1.bf16.msra.mxu0 %v706
    %801 = vmatprep.subr.bf16.mxu0 %v703
    %802 = vmatpush1.bf16.msra.mxu0 %v702
    %803 = vmatprep.subr.bf16.mxu0 %v699
    %804 = vmatpush1.bf16.msra.mxu0 %v698
    %805 = vmatprep.subr.bf16.mxu0 %v695
    %806 = vmatpush1.bf16.msra.mxu0 %v694
    %807 = vmatprep.subr.bf16.mxu0 %v691
    %808 = vmatpush1.bf16.msra.mxu0 %v690
    %809 = vmatprep.subr.bf16.mxu0 0
    %810 = vmatpush2.bf16.msra.mxu0 0
    %811 = vmatprep.subr.bf16.mxu0 0
    %812 = vmatpush2.bf16.msra.mxu0 0
    %813 = vmatprep.subr.bf16.mxu0 0
    %814 = vmatpush2.bf16.msra.mxu0 0
    %815 = vmatprep.subr.bf16.mxu0 0
    %816 = vmatpush2.bf16.msra.mxu0 0
    %817 = vmatprep.subr.bf16.mxu0 0
    %818 = vmatpush2.bf16.msra.mxu0 0
    %819 = vmatprep.subr.bf16.mxu0 0
    %820 = vmatpush2.bf16.msra.mxu0 0
    %821 = vmatprep.subr.bf16.mxu0 0
    %822 = vmatpush2.bf16.msra.mxu0 0
    %823 = vmatprep.subr.bf16.mxu0 0
    %824 = vmatpush2.bf16.msra.mxu0 0
    %825 = vmatprep.mubr.bf16.mxu0 0
    %826 = vmatmul.mubr.bf16.gmra.mxu0 %v282
    %v827 = vpop.f32.mrf.mxu0
    %v828 = vadd.f32 %v586, %v827
    %v829 = vpop.f32.mrf.mxu0
    %v830 = vadd.f32 %v588, %v829
    %v831 = vpop.f32.mrf.mxu0
    %v832 = vpop.f32.mrf.mxu0
    %833 = vdwg.mxu0
    %834 = vmatprep.subr.bf16.mxu0 %v717
    %835 = vmatpush1.bf16.msra.mxu0 %v716
    %836 = vmatprep.subr.bf16.mxu0 %v713
    %837 = vmatpush1.bf16.msra.mxu0 %v712
    %838 = vmatprep.subr.bf16.mxu0 %v709
    %839 = vmatpush1.bf16.msra.mxu0 %v708
    %840 = vmatprep.subr.bf16.mxu0 %v705
    %841 = vmatpush1.bf16.msra.mxu0 %v704
    %842 = vmatprep.subr.bf16.mxu0 %v701
    %843 = vmatpush1.bf16.msra.mxu0 %v700
    %844 = vmatprep.subr.bf16.mxu0 %v697
    %845 = vmatpush1.bf16.msra.mxu0 %v696
    %846 = vmatprep.subr.bf16.mxu0 %v693
    %847 = vmatpush1.bf16.msra.mxu0 %v692
    %848 = vmatprep.subr.bf16.mxu0 %v689
    %849 = vmatpush1.bf16.msra.mxu0 %v688
    %850 = vmatprep.subr.bf16.mxu0 0
    %851 = vmatpush2.bf16.msra.mxu0 0
    %852 = vmatprep.subr.bf16.mxu0 0
    %853 = vmatpush2.bf16.msra.mxu0 0
    %854 = vmatprep.subr.bf16.mxu0 0
    %855 = vmatpush2.bf16.msra.mxu0 0
    %856 = vmatprep.subr.bf16.mxu0 0
    %857 = vmatpush2.bf16.msra.mxu0 0
    %858 = vmatprep.subr.bf16.mxu0 0
    %859 = vmatpush2.bf16.msra.mxu0 0
    %860 = vmatprep.subr.bf16.mxu0 0
    %861 = vmatpush2.bf16.msra.mxu0 0
    %862 = vmatprep.subr.bf16.mxu0 0
    %863 = vmatpush2.bf16.msra.mxu0 0
    %864 = vmatprep.subr.bf16.mxu0 0
    %865 = vmatpush2.bf16.msra.mxu0 0
    %866 = vmatprep.mubr.bf16.mxu0 0
    %867 = vmatmul.mubr.bf16.gmra.mxu0 %v285
    %v868 = vpop.f32.mrf.mxu0
    %v869 = vadd.f32 0.0, %v868
    %v870 = vpop.f32.mrf.mxu0
    %v871 = vadd.f32 0.0, %v870
    %v872 = vpop.f32.mrf.mxu0
    %v873 = vpop.f32.mrf.mxu0
    %874 = vdwg.mxu0
    %875 = vmatprep.subr.bf16.mxu0 %v719
    %876 = vmatpush1.bf16.msra.mxu0 %v718
    %877 = vmatprep.subr.bf16.mxu0 %v715
    %878 = vmatpush1.bf16.msra.mxu0 %v714
    %879 = vmatprep.subr.bf16.mxu0 %v711
    %880 = vmatpush1.bf16.msra.mxu0 %v710
    %881 = vmatprep.subr.bf16.mxu0 %v707
    %882 = vmatpush1.bf16.msra.mxu0 %v706
    %883 = vmatprep.subr.bf16.mxu0 %v703
    %884 = vmatpush1.bf16.msra.mxu0 %v702
    %885 = vmatprep.subr.bf16.mxu0 %v699
    %886 = vmatpush1.bf16.msra.mxu0 %v698
    %887 = vmatprep.subr.bf16.mxu0 %v695
    %888 = vmatpush1.bf16.msra.mxu0 %v694
    %889 = vmatprep.subr.bf16.mxu0 %v691
    %890 = vmatpush1.bf16.msra.mxu0 %v690
    %891 = vmatprep.subr.bf16.mxu0 0
    %892 = vmatpush2.bf16.msra.mxu0 0
    %893 = vmatprep.subr.bf16.mxu0 0
    %894 = vmatpush2.bf16.msra.mxu0 0
    %895 = vmatprep.subr.bf16.mxu0 0
    %896 = vmatpush2.bf16.msra.mxu0 0
    %897 = vmatprep.subr.bf16.mxu0 0
    %898 = vmatpush2.bf16.msra.mxu0 0
    %899 = vmatprep.subr.bf16.mxu0 0
    %900 = vmatpush2.bf16.msra.mxu0 0
    %901 = vmatprep.subr.bf16.mxu0 0
    %902 = vmatpush2.bf16.msra.mxu0 0
    %903 = vmatprep.subr.bf16.mxu0 0
    %904 = vmatpush2.bf16.msra.mxu0 0
    %905 = vmatprep.subr.bf16.mxu0 0
    %906 = vmatpush2.bf16.msra.mxu0 0
    %907 = vmatprep.mubr.bf16.mxu0 0
    %908 = vmatmul.mubr.bf16.gmra.mxu0 %v285
    %v909 = vpop.f32.mrf.mxu0
    %v910 = vadd.f32 0.0, %v909
    %v911 = vpop.f32.mrf.mxu0
    %v912 = vadd.f32 0.0, %v911
    %v913 = vpop.f32.mrf.mxu0
    %v914 = vpop.f32.mrf.mxu0
    %915 = vdwg.mxu0
    %v916 = vadd.f32 %v787, %v869
    %v917 = vadd.f32 %v789, %v871
    %v918 = vadd.f32 %v828, %v910
    %v919 = vadd.f32 %v830, %v912
    %v920 = vld [vmem:[%s5] sm:$0xf]
    %v922 = vlaneseq
    %v923 = vshrl.u32 %v922, 7
    %v924 = vsub.s32 0, %v923
    %v925 = vrot.slane %v920, %v924
    %v926 = vlaneseq
    %v927 = vshrl.u32 %v926, 7
    %v928 = vsub.s32 1, %v927
    %v929 = vrot.slane %v920, %v928
    %v930 = vlaneseq
    %v931 = vshrl.u32 %v930, 7
    %v932 = vsub.s32 2, %v931
    %v933 = vrot.slane %v920, %v932
    %v934 = vlaneseq
    %v935 = vshrl.u32 %v934, 7
    %v936 = vsub.s32 3, %v935
    %v937 = vrot.slane %v920, %v936
    %v942 = vadd.f32 %v916, %v925
    %v943 = vadd.f32 %v917, %v929
    %v944 = vadd.f32 %v918, %v933
    %v945 = vadd.f32 %v919, %v937
    %v946 = vtanh.pop %v942
    %v947 = vtanh.pop %v943
    %v948 = vtanh.pop %v944
    %v949 = vtanh.pop %v945
    %v950 = vpack.c.bf16 %v946, %v946
    %v951 = vpack.c.bf16 %v947, %v947
    %v952 = vpack.c.bf16 %v948, %v948
    %v953 = vpack.c.bf16 %v949, %v949
    %v954 = vunpack.c.l.bf16 %v950
    %v955 = vunpack.c.l.bf16 %v951
    %v956 = vunpack.c.l.bf16 %v952
    %v957 = vunpack.c.l.bf16 %v953
    %v958 = vsub.f32 %v946, %v954
    %v959 = vsub.f32 %v947, %v955
    %v960 = vsub.f32 %v948, %v956
    %v961 = vsub.f32 %v949, %v957
    %v962 = vpack.c.bf16 %v958, %v958
    %v963 = vpack.c.bf16 %v959, %v959
    %v964 = vpack.c.bf16 %v960, %v960
    %v965 = vpack.c.bf16 %v961, %v961
    %v966 = vld [vmem:[#allocation6] sm:$0xf]
    %v967 = vld [vmem:[#allocation6 + $0x4] sm:$0xf]
    %v968 = vld [vmem:[#allocation6 + $0x8] sm:$0xf]
    %v969 = vld [vmem:[#allocation6 + $0xc] sm:$0xf]
    %v970 = vld [vmem:[#allocation6 + $0x10] sm:$0xf]
    %v971 = vld [vmem:[#allocation6 + $0x14] sm:$0xf]
    %v972 = vld [vmem:[#allocation6 + $0x18] sm:$0xf]
    %v973 = vld [vmem:[#allocation6 + $0x1c] sm:$0xf]
    %v974 = vld [vmem:[#allocation6 + $0x20] sm:$0xf]
    %v975 = vld [vmem:[#allocation6 + $0x24] sm:$0xf]
    %v976 = vld [vmem:[#allocation6 + $0x28] sm:$0xf]
    %v977 = vld [vmem:[#allocation6 + $0x2c] sm:$0xf]
    %v978 = vld [vmem:[#allocation6 + $0x30] sm:$0xf]
    %v979 = vld [vmem:[#allocation6 + $0x34] sm:$0xf]
    %v980 = vld [vmem:[#allocation6 + $0x38] sm:$0xf]
    %v981 = vld [vmem:[#allocation6 + $0x3c] sm:$0xf]
    %v982 = vld [vmem:[#allocation6 + $0x40] sm:$0xf]
    %v983 = vld [vmem:[#allocation6 + $0x44] sm:$0xf]
    %v984 = vld [vmem:[#allocation6 + $0x48] sm:$0xf]
    %v985 = vld [vmem:[#allocation6 + $0x4c] sm:$0xf]
    %v986 = vld [vmem:[#allocation6 + $0x50] sm:$0xf]
    %v987 = vld [vmem:[#allocation6 + $0x54] sm:$0xf]
    %v988 = vld [vmem:[#allocation6 + $0x58] sm:$0xf]
    %v989 = vld [vmem:[#allocation6 + $0x5c] sm:$0xf]
    %v990 = vld [vmem:[#allocation6 + $0x60] sm:$0xf]
    %v991 = vld [vmem:[#allocation6 + $0x64] sm:$0xf]
    %v992 = vld [vmem:[#allocation6 + $0x68] sm:$0xf]
    %v993 = vld [vmem:[#allocation6 + $0x6c] sm:$0xf]
    %v994 = vld [vmem:[#allocation6 + $0x70] sm:$0xf]
    %v995 = vld [vmem:[#allocation6 + $0x74] sm:$0xf]
    %v996 = vld [vmem:[#allocation6 + $0x78] sm:$0xf]
    %v997 = vld [vmem:[#allocation6 + $0x7c] sm:$0xf]
    %v998 = vld [vmem:[#allocation6 + $0x80] sm:$0xf]
    %v999 = vld [vmem:[#allocation6 + $0x84] sm:$0xf]
    %v1000 = vld [vmem:[#allocation6 + $0x88] sm:$0xf]
    %v1001 = vld [vmem:[#allocation6 + $0x8c] sm:$0xf]
    %v1002 = vld [vmem:[#allocation6 + $0x90] sm:$0xf]
    %v1003 = vld [vmem:[#allocation6 + $0x94] sm:$0xf]
    %v1004 = vld [vmem:[#allocation6 + $0x98] sm:$0xf]
    %v1005 = vld [vmem:[#allocation6 + $0x9c] sm:$0xf]
    %v1006 = vld [vmem:[#allocation6 + $0xa0] sm:$0xf]
    %v1007 = vld [vmem:[#allocation6 + $0xa4] sm:$0xf]
    %v1008 = vld [vmem:[#allocation6 + $0xa8] sm:$0xf]
    %v1009 = vld [vmem:[#allocation6 + $0xac] sm:$0xf]
    %v1010 = vld [vmem:[#allocation6 + $0xb0] sm:$0xf]
    %v1011 = vld [vmem:[#allocation6 + $0xb4] sm:$0xf]
    %v1012 = vld [vmem:[#allocation6 + $0xb8] sm:$0xf]
    %v1013 = vld [vmem:[#allocation6 + $0xbc] sm:$0xf]
    %v1014 = vld [vmem:[#allocation6 + $0xc0] sm:$0xf]
    %v1015 = vld [vmem:[#allocation6 + $0xc4] sm:$0xf]
    %v1016 = vld [vmem:[#allocation6 + $0xc8] sm:$0xf]
    %v1017 = vld [vmem:[#allocation6 + $0xcc] sm:$0xf]
    %v1018 = vld [vmem:[#allocation6 + $0xd0] sm:$0xf]
    %v1019 = vld [vmem:[#allocation6 + $0xd4] sm:$0xf]
    %v1020 = vld [vmem:[#allocation6 + $0xd8] sm:$0xf]
    %v1021 = vld [vmem:[#allocation6 + $0xdc] sm:$0xf]
    %v1022 = vld [vmem:[#allocation6 + $0xe0] sm:$0xf]
    %v1023 = vld [vmem:[#allocation6 + $0xe4] sm:$0xf]
    %v1024 = vld [vmem:[#allocation6 + $0xe8] sm:$0xf]
    %v1025 = vld [vmem:[#allocation6 + $0xec] sm:$0xf]
    %v1026 = vld [vmem:[#allocation6 + $0xf0] sm:$0xf]
    %v1027 = vld [vmem:[#allocation6 + $0xf4] sm:$0xf]
    %v1028 = vld [vmem:[#allocation6 + $0xf8] sm:$0xf]
    %v1029 = vld [vmem:[#allocation6 + $0xfc] sm:$0xf]
    %v1030 = vld [vmem:[#allocation7] sm:$0xf]
    %v1031 = vld [vmem:[#allocation7 + $0x4] sm:$0xf]
    %v1032 = vld [vmem:[#allocation7 + $0x8] sm:$0xf]
    %v1033 = vld [vmem:[#allocation7 + $0xc] sm:$0xf]
    %v1034 = vld [vmem:[#allocation7 + $0x10] sm:$0xf]
    %v1035 = vld [vmem:[#allocation7 + $0x14] sm:$0xf]
    %v1036 = vld [vmem:[#allocation7 + $0x18] sm:$0xf]
    %v1037 = vld [vmem:[#allocation7 + $0x1c] sm:$0xf]
    %v1038 = vld [vmem:[#allocation7 + $0x20] sm:$0xf]
    %v1039 = vld [vmem:[#allocation7 + $0x24] sm:$0xf]
    %v1040 = vld [vmem:[#allocation7 + $0x28] sm:$0xf]
    %v1041 = vld [vmem:[#allocation7 + $0x2c] sm:$0xf]
    %v1042 = vld [vmem:[#allocation7 + $0x30] sm:$0xf]
    %v1043 = vld [vmem:[#allocation7 + $0x34] sm:$0xf]
    %v1044 = vld [vmem:[#allocation7 + $0x38] sm:$0xf]
    %v1045 = vld [vmem:[#allocation7 + $0x3c] sm:$0xf]
    %v1046 = vld [vmem:[#allocation7 + $0x40] sm:$0xf]
    %v1047 = vld [vmem:[#allocation7 + $0x44] sm:$0xf]
    %v1048 = vld [vmem:[#allocation7 + $0x48] sm:$0xf]
    %v1049 = vld [vmem:[#allocation7 + $0x4c] sm:$0xf]
    %v1050 = vld [vmem:[#allocation7 + $0x50] sm:$0xf]
    %v1051 = vld [vmem:[#allocation7 + $0x54] sm:$0xf]
    %v1052 = vld [vmem:[#allocation7 + $0x58] sm:$0xf]
    %v1053 = vld [vmem:[#allocation7 + $0x5c] sm:$0xf]
    %v1054 = vld [vmem:[#allocation7 + $0x60] sm:$0xf]
    %v1055 = vld [vmem:[#allocation7 + $0x64] sm:$0xf]
    %v1056 = vld [vmem:[#allocation7 + $0x68] sm:$0xf]
    %v1057 = vld [vmem:[#allocation7 + $0x6c] sm:$0xf]
    %v1058 = vld [vmem:[#allocation7 + $0x70] sm:$0xf]
    %v1059 = vld [vmem:[#allocation7 + $0x74] sm:$0xf]
    %v1060 = vld [vmem:[#allocation7 + $0x78] sm:$0xf]
    %v1061 = vld [vmem:[#allocation7 + $0x7c] sm:$0xf]
    %v1062 = vld [vmem:[#allocation7 + $0x80] sm:$0xf]
    %v1063 = vld [vmem:[#allocation7 + $0x84] sm:$0xf]
    %v1064 = vld [vmem:[#allocation7 + $0x88] sm:$0xf]
    %v1065 = vld [vmem:[#allocation7 + $0x8c] sm:$0xf]
    %v1066 = vld [vmem:[#allocation7 + $0x90] sm:$0xf]
    %v1067 = vld [vmem:[#allocation7 + $0x94] sm:$0xf]
    %v1068 = vld [vmem:[#allocation7 + $0x98] sm:$0xf]
    %v1069 = vld [vmem:[#allocation7 + $0x9c] sm:$0xf]
    %v1070 = vld [vmem:[#allocation7 + $0xa0] sm:$0xf]
    %v1071 = vld [vmem:[#allocation7 + $0xa4] sm:$0xf]
    %v1072 = vld [vmem:[#allocation7 + $0xa8] sm:$0xf]
    %v1073 = vld [vmem:[#allocation7 + $0xac] sm:$0xf]
    %v1074 = vld [vmem:[#allocation7 + $0xb0] sm:$0xf]
    %v1075 = vld [vmem:[#allocation7 + $0xb4] sm:$0xf]
    %v1076 = vld [vmem:[#allocation7 + $0xb8] sm:$0xf]
    %v1077 = vld [vmem:[#allocation7 + $0xbc] sm:$0xf]
    %v1078 = vld [vmem:[#allocation7 + $0xc0] sm:$0xf]
    %v1079 = vld [vmem:[#allocation7 + $0xc4] sm:$0xf]
    %v1080 = vld [vmem:[#allocation7 + $0xc8] sm:$0xf]
    %v1081 = vld [vmem:[#allocation7 + $0xcc] sm:$0xf]
    %v1082 = vld [vmem:[#allocation7 + $0xd0] sm:$0xf]
    %v1083 = vld [vmem:[#allocation7 + $0xd4] sm:$0xf]
    %v1084 = vld [vmem:[#allocation7 + $0xd8] sm:$0xf]
    %v1085 = vld [vmem:[#allocation7 + $0xdc] sm:$0xf]
    %v1086 = vld [vmem:[#allocation7 + $0xe0] sm:$0xf]
    %v1087 = vld [vmem:[#allocation7 + $0xe4] sm:$0xf]
    %v1088 = vld [vmem:[#allocation7 + $0xe8] sm:$0xf]
    %v1089 = vld [vmem:[#allocation7 + $0xec] sm:$0xf]
    %v1090 = vld [vmem:[#allocation7 + $0xf0] sm:$0xf]
    %v1091 = vld [vmem:[#allocation7 + $0xf4] sm:$0xf]
    %v1092 = vld [vmem:[#allocation7 + $0xf8] sm:$0xf]
    %v1093 = vld [vmem:[#allocation7 + $0xfc] sm:$0xf]
    %v1158 = vunpack.c.l.b16 %v1030
    %v1159 = vunpack.c.l.b16 %v1031
    %v1160 = vunpack.c.l.b16 %v1032
    %v1161 = vunpack.c.l.b16 %v1033
    %v1162 = vunpack.c.l.b16 %v1034
    %v1163 = vunpack.c.l.b16 %v1035
    %v1164 = vunpack.c.l.b16 %v1036
    %v1165 = vunpack.c.l.b16 %v1037
    %v1166 = vunpack.c.l.b16 %v1038
    %v1167 = vunpack.c.l.b16 %v1039
    %v1168 = vunpack.c.l.b16 %v1040
    %v1169 = vunpack.c.l.b16 %v1041
    %v1170 = vunpack.c.l.b16 %v1042
    %v1171 = vunpack.c.l.b16 %v1043
    %v1172 = vunpack.c.l.b16 %v1044
    %v1173 = vunpack.c.l.b16 %v1045
    %v1174 = vunpack.c.l.b16 %v1046
    %v1175 = vunpack.c.l.b16 %v1047
    %v1176 = vunpack.c.l.b16 %v1048
    %v1177 = vunpack.c.l.b16 %v1049
    %v1178 = vunpack.c.l.b16 %v1050
    %v1179 = vunpack.c.l.b16 %v1051
    %v1180 = vunpack.c.l.b16 %v1052
    %v1181 = vunpack.c.l.b16 %v1053
    %v1182 = vunpack.c.l.b16 %v1054
    %v1183 = vunpack.c.l.b16 %v1055
    %v1184 = vunpack.c.l.b16 %v1056
    %v1185 = vunpack.c.l.b16 %v1057
    %v1186 = vunpack.c.l.b16 %v1058
    %v1187 = vunpack.c.l.b16 %v1059
    %v1188 = vunpack.c.l.b16 %v1060
    %v1189 = vunpack.c.l.b16 %v1061
    %v1190 = vunpack.c.l.b16 %v1062
    %v1191 = vunpack.c.l.b16 %v1063
    %v1192 = vunpack.c.l.b16 %v1064
    %v1193 = vunpack.c.l.b16 %v1065
    %v1194 = vunpack.c.l.b16 %v1066
    %v1195 = vunpack.c.l.b16 %v1067
    %v1196 = vunpack.c.l.b16 %v1068
    %v1197 = vunpack.c.l.b16 %v1069
    %v1198 = vunpack.c.l.b16 %v1070
    %v1199 = vunpack.c.l.b16 %v1071
    %v1200 = vunpack.c.l.b16 %v1072
    %v1201 = vunpack.c.l.b16 %v1073
    %v1202 = vunpack.c.l.b16 %v1074
    %v1203 = vunpack.c.l.b16 %v1075
    %v1204 = vunpack.c.l.b16 %v1076
    %v1205 = vunpack.c.l.b16 %v1077
    %v1206 = vunpack.c.l.b16 %v1078
    %v1207 = vunpack.c.l.b16 %v1079
    %v1208 = vunpack.c.l.b16 %v1080
    %v1209 = vunpack.c.l.b16 %v1081
    %v1210 = vunpack.c.l.b16 %v1082
    %v1211 = vunpack.c.l.b16 %v1083
    %v1212 = vunpack.c.l.b16 %v1084
    %v1213 = vunpack.c.l.b16 %v1085
    %v1214 = vunpack.c.l.b16 %v1086
    %v1215 = vunpack.c.l.b16 %v1087
    %v1216 = vunpack.c.l.b16 %v1088
    %v1217 = vunpack.c.l.b16 %v1089
    %v1218 = vunpack.c.l.b16 %v1090
    %v1219 = vunpack.c.l.b16 %v1091
    %v1220 = vunpack.c.l.b16 %v1092
    %v1221 = vunpack.c.l.b16 %v1093
    %v1222 = vpack.c.b16 %v1159, %v1158
    %v1223 = vpack.c.b16 %v1161, %v1160
    %v1224 = vpack.c.b16 %v1163, %v1162
    %v1225 = vpack.c.b16 %v1165, %v1164
    %v1226 = vpack.c.b16 %v1167, %v1166
    %v1227 = vpack.c.b16 %v1169, %v1168
    %v1228 = vpack.c.b16 %v1171, %v1170
    %v1229 = vpack.c.b16 %v1173, %v1172
    %v1230 = vpack.c.b16 %v1175, %v1174
    %v1231 = vpack.c.b16 %v1177, %v1176
    %v1232 = vpack.c.b16 %v1179, %v1178
    %v1233 = vpack.c.b16 %v1181, %v1180
    %v1234 = vpack.c.b16 %v1183, %v1182
    %v1235 = vpack.c.b16 %v1185, %v1184
    %v1236 = vpack.c.b16 %v1187, %v1186
    %v1237 = vpack.c.b16 %v1189, %v1188
    %v1238 = vpack.c.b16 %v1191, %v1190
    %v1239 = vpack.c.b16 %v1193, %v1192
    %v1240 = vpack.c.b16 %v1195, %v1194
    %v1241 = vpack.c.b16 %v1197, %v1196
    %v1242 = vpack.c.b16 %v1199, %v1198
    %v1243 = vpack.c.b16 %v1201, %v1200
    %v1244 = vpack.c.b16 %v1203, %v1202
    %v1245 = vpack.c.b16 %v1205, %v1204
    %v1246 = vpack.c.b16 %v1207, %v1206
    %v1247 = vpack.c.b16 %v1209, %v1208
    %v1248 = vpack.c.b16 %v1211, %v1210
    %v1249 = vpack.c.b16 %v1213, %v1212
    %v1250 = vpack.c.b16 %v1215, %v1214
    %v1251 = vpack.c.b16 %v1217, %v1216
    %v1252 = vpack.c.b16 %v1219, %v1218
    %v1253 = vpack.c.b16 %v1221, %v1220
    %1286 = vmatprep.subr.bf16.mxu0 0
    %1287 = vmatpush1.bf16.msra.mxu0 %v1229
    %1288 = vmatprep.subr.bf16.mxu0 0
    %1289 = vmatpush1.bf16.msra.mxu0 %v1228
    %1290 = vmatprep.subr.bf16.mxu0 0
    %1291 = vmatpush1.bf16.msra.mxu0 %v1227
    %1292 = vmatprep.subr.bf16.mxu0 0
    %1293 = vmatpush1.bf16.msra.mxu0 %v1226
    %1294 = vmatprep.subr.bf16.mxu0 0
    %1295 = vmatpush1.bf16.msra.mxu0 %v1225
    %1296 = vmatprep.subr.bf16.mxu0 0
    %1297 = vmatpush1.bf16.msra.mxu0 %v1224
    %1298 = vmatprep.subr.bf16.mxu0 0
    %1299 = vmatpush1.bf16.msra.mxu0 %v1223
    %1300 = vmatprep.subr.bf16.mxu0 0
    %1301 = vmatpush1.bf16.msra.mxu0 %v1222
    %1302 = vmatprep.subr.bf16.mxu0 0
    %1303 = vmatpush2.bf16.msra.mxu0 %v1237
    %1304 = vmatprep.subr.bf16.mxu0 0
    %1305 = vmatpush2.bf16.msra.mxu0 %v1236
    %1306 = vmatprep.subr.bf16.mxu0 0
    %1307 = vmatpush2.bf16.msra.mxu0 %v1235
    %1308 = vmatprep.subr.bf16.mxu0 0
    %1309 = vmatpush2.bf16.msra.mxu0 %v1234
    %1310 = vmatprep.subr.bf16.mxu0 0
    %1311 = vmatpush2.bf16.msra.mxu0 %v1233
    %1312 = vmatprep.subr.bf16.mxu0 0
    %1313 = vmatpush2.bf16.msra.mxu0 %v1232
    %1314 = vmatprep.subr.bf16.mxu0 0
    %1315 = vmatpush2.bf16.msra.mxu0 %v1231
    %1316 = vmatprep.subr.bf16.mxu0 0
    %1317 = vmatpush2.bf16.msra.mxu0 %v1230
    %1318 = vmatprep.mubr.bf16.mxu0 %v951
    %1319 = vmatmul.mubr.bf16.gmra.mxu0 %v950
    %v1320 = vpop.f32.mrf.mxu0
    %v1321 = vadd.f32 0.0, %v1320
    %v1322 = vpop.f32.mrf.mxu0
    %v1323 = vpop.f32.mrf.mxu0
    %v1324 = vpop.f32.mrf.mxu0
    %1325 = vdwg.mxu0
    %1326 = vmatprep.subr.bf16.mxu0 0
    %1327 = vmatpush1.bf16.msra.mxu0 %v1245
    %1328 = vmatprep.subr.bf16.mxu0 0
    %1329 = vmatpush1.bf16.msra.mxu0 %v1244
    %1330 = vmatprep.subr.bf16.mxu0 0
    %1331 = vmatpush1.bf16.msra.mxu0 %v1243
    %1332 = vmatprep.subr.bf16.mxu0 0
    %1333 = vmatpush1.bf16.msra.mxu0 %v1242
    %1334 = vmatprep.subr.bf16.mxu0 0
    %1335 = vmatpush1.bf16.msra.mxu0 %v1241
    %1336 = vmatprep.subr.bf16.mxu0 0
    %1337 = vmatpush1.bf16.msra.mxu0 %v1240
    %1338 = vmatprep.subr.bf16.mxu0 0
    %1339 = vmatpush1.bf16.msra.mxu0 %v1239
    %1340 = vmatprep.subr.bf16.mxu0 0
    %1341 = vmatpush1.bf16.msra.mxu0 %v1238
    %1342 = vmatprep.subr.bf16.mxu0 0
    %1343 = vmatpush2.bf16.msra.mxu0 %v1253
    %1344 = vmatprep.subr.bf16.mxu0 0
    %1345 = vmatpush2.bf16.msra.mxu0 %v1252
    %1346 = vmatprep.subr.bf16.mxu0 0
    %1347 = vmatpush2.bf16.msra.mxu0 %v1251
    %1348 = vmatprep.subr.bf16.mxu0 0
    %1349 = vmatpush2.bf16.msra.mxu0 %v1250
    %1350 = vmatprep.subr.bf16.mxu0 0
    %1351 = vmatpush2.bf16.msra.mxu0 %v1249
    %1352 = vmatprep.subr.bf16.mxu0 0
    %1353 = vmatpush2.bf16.msra.mxu0 %v1248
    %1354 = vmatprep.subr.bf16.mxu0 0
    %1355 = vmatpush2.bf16.msra.mxu0 %v1247
    %1356 = vmatprep.subr.bf16.mxu0 0
    %1357 = vmatpush2.bf16.msra.mxu0 %v1246
    %1358 = vmatprep.mubr.bf16.mxu0 %v953
    %1359 = vmatmul.mubr.bf16.gmra.mxu0 %v952
    %v1360 = vpop.f32.mrf.mxu0
    %v1361 = vadd.f32 %v1321, %v1360
    %v1362 = vpop.f32.mrf.mxu0
    %v1363 = vpop.f32.mrf.mxu0
    %v1364 = vpop.f32.mrf.mxu0
    %1365 = vdwg.mxu0
    %v1430 = vunpack.c.l.b16 %v966
    %v1431 = vunpack.c.l.b16 %v967
    %v1432 = vunpack.c.l.b16 %v968
    %v1433 = vunpack.c.l.b16 %v969
    %v1434 = vunpack.c.l.b16 %v970
    %v1435 = vunpack.c.l.b16 %v971
    %v1436 = vunpack.c.l.b16 %v972
    %v1437 = vunpack.c.l.b16 %v973
    %v1438 = vunpack.c.l.b16 %v974
    %v1439 = vunpack.c.l.b16 %v975
    %v1440 = vunpack.c.l.b16 %v976
    %v1441 = vunpack.c.l.b16 %v977
    %v1442 = vunpack.c.l.b16 %v978
    %v1443 = vunpack.c.l.b16 %v979
    %v1444 = vunpack.c.l.b16 %v980
    %v1445 = vunpack.c.l.b16 %v981
    %v1446 = vunpack.c.l.b16 %v982
    %v1447 = vunpack.c.l.b16 %v983
    %v1448 = vunpack.c.l.b16 %v984
    %v1449 = vunpack.c.l.b16 %v985
    %v1450 = vunpack.c.l.b16 %v986
    %v1451 = vunpack.c.l.b16 %v987
    %v1452 = vunpack.c.l.b16 %v988
    %v1453 = vunpack.c.l.b16 %v989
    %v1454 = vunpack.c.l.b16 %v990
    %v1455 = vunpack.c.l.b16 %v991
    %v1456 = vunpack.c.l.b16 %v992
    %v1457 = vunpack.c.l.b16 %v993
    %v1458 = vunpack.c.l.b16 %v994
    %v1459 = vunpack.c.l.b16 %v995
    %v1460 = vunpack.c.l.b16 %v996
    %v1461 = vunpack.c.l.b16 %v997
    %v1462 = vunpack.c.l.b16 %v998
    %v1463 = vunpack.c.l.b16 %v999
    %v1464 = vunpack.c.l.b16 %v1000
    %v1465 = vunpack.c.l.b16 %v1001
    %v1466 = vunpack.c.l.b16 %v1002
    %v1467 = vunpack.c.l.b16 %v1003
    %v1468 = vunpack.c.l.b16 %v1004
    %v1469 = vunpack.c.l.b16 %v1005
    %v1470 = vunpack.c.l.b16 %v1006
    %v1471 = vunpack.c.l.b16 %v1007
    %v1472 = vunpack.c.l.b16 %v1008
    %v1473 = vunpack.c.l.b16 %v1009
    %v1474 = vunpack.c.l.b16 %v1010
    %v1475 = vunpack.c.l.b16 %v1011
    %v1476 = vunpack.c.l.b16 %v1012
    %v1477 = vunpack.c.l.b16 %v1013
    %v1478 = vunpack.c.l.b16 %v1014
    %v1479 = vunpack.c.l.b16 %v1015
    %v1480 = vunpack.c.l.b16 %v1016
    %v1481 = vunpack.c.l.b16 %v1017
    %v1482 = vunpack.c.l.b16 %v1018
    %v1483 = vunpack.c.l.b16 %v1019
    %v1484 = vunpack.c.l.b16 %v1020
    %v1485 = vunpack.c.l.b16 %v1021
    %v1486 = vunpack.c.l.b16 %v1022
    %v1487 = vunpack.c.l.b16 %v1023
    %v1488 = vunpack.c.l.b16 %v1024
    %v1489 = vunpack.c.l.b16 %v1025
    %v1490 = vunpack.c.l.b16 %v1026
    %v1491 = vunpack.c.l.b16 %v1027
    %v1492 = vunpack.c.l.b16 %v1028
    %v1493 = vunpack.c.l.b16 %v1029
    %v1494 = vpack.c.b16 %v1431, %v1430
    %v1495 = vpack.c.b16 %v1433, %v1432
    %v1496 = vpack.c.b16 %v1435, %v1434
    %v1497 = vpack.c.b16 %v1437, %v1436
    %v1498 = vpack.c.b16 %v1439, %v1438
    %v1499 = vpack.c.b16 %v1441, %v1440
    %v1500 = vpack.c.b16 %v1443, %v1442
    %v1501 = vpack.c.b16 %v1445, %v1444
    %v1502 = vpack.c.b16 %v1447, %v1446
    %v1503 = vpack.c.b16 %v1449, %v1448
    %v1504 = vpack.c.b16 %v1451, %v1450
    %v1505 = vpack.c.b16 %v1453, %v1452
    %v1506 = vpack.c.b16 %v1455, %v1454
    %v1507 = vpack.c.b16 %v1457, %v1456
    %v1508 = vpack.c.b16 %v1459, %v1458
    %v1509 = vpack.c.b16 %v1461, %v1460
    %v1510 = vpack.c.b16 %v1463, %v1462
    %v1511 = vpack.c.b16 %v1465, %v1464
    %v1512 = vpack.c.b16 %v1467, %v1466
    %v1513 = vpack.c.b16 %v1469, %v1468
    %v1514 = vpack.c.b16 %v1471, %v1470
    %v1515 = vpack.c.b16 %v1473, %v1472
    %v1516 = vpack.c.b16 %v1475, %v1474
    %v1517 = vpack.c.b16 %v1477, %v1476
    %v1518 = vpack.c.b16 %v1479, %v1478
    %v1519 = vpack.c.b16 %v1481, %v1480
    %v1520 = vpack.c.b16 %v1483, %v1482
    %v1521 = vpack.c.b16 %v1485, %v1484
    %v1522 = vpack.c.b16 %v1487, %v1486
    %v1523 = vpack.c.b16 %v1489, %v1488
    %v1524 = vpack.c.b16 %v1491, %v1490
    %v1525 = vpack.c.b16 %v1493, %v1492
    %1558 = vmatprep.subr.bf16.mxu0 0
    %1559 = vmatpush1.bf16.msra.mxu0 %v1501
    %1560 = vmatprep.subr.bf16.mxu0 0
    %1561 = vmatpush1.bf16.msra.mxu0 %v1500
    %1562 = vmatprep.subr.bf16.mxu0 0
    %1563 = vmatpush1.bf16.msra.mxu0 %v1499
    %1564 = vmatprep.subr.bf16.mxu0 0
    %1565 = vmatpush1.bf16.msra.mxu0 %v1498
    %1566 = vmatprep.subr.bf16.mxu0 0
    %1567 = vmatpush1.bf16.msra.mxu0 %v1497
    %1568 = vmatprep.subr.bf16.mxu0 0
    %1569 = vmatpush1.bf16.msra.mxu0 %v1496
    %1570 = vmatprep.subr.bf16.mxu0 0
    %1571 = vmatpush1.bf16.msra.mxu0 %v1495
    %1572 = vmatprep.subr.bf16.mxu0 0
    %1573 = vmatpush1.bf16.msra.mxu0 %v1494
    %1574 = vmatprep.subr.bf16.mxu0 0
    %1575 = vmatpush2.bf16.msra.mxu0 %v1509
    %1576 = vmatprep.subr.bf16.mxu0 0
    %1577 = vmatpush2.bf16.msra.mxu0 %v1508
    %1578 = vmatprep.subr.bf16.mxu0 0
    %1579 = vmatpush2.bf16.msra.mxu0 %v1507
    %1580 = vmatprep.subr.bf16.mxu0 0
    %1581 = vmatpush2.bf16.msra.mxu0 %v1506
    %1582 = vmatprep.subr.bf16.mxu0 0
    %1583 = vmatpush2.bf16.msra.mxu0 %v1505
    %1584 = vmatprep.subr.bf16.mxu0 0
    %1585 = vmatpush2.bf16.msra.mxu0 %v1504
    %1586 = vmatprep.subr.bf16.mxu0 0
    %1587 = vmatpush2.bf16.msra.mxu0 %v1503
    %1588 = vmatprep.subr.bf16.mxu0 0
    %1589 = vmatpush2.bf16.msra.mxu0 %v1502
    %1590 = vmatprep.mubr.bf16.mxu0 %v951
    %1591 = vmatmul.mubr.bf16.gmra.mxu0 %v950
    %v1592 = vpop.f32.mrf.mxu0
    %v1593 = vadd.f32 %v1361, %v1592
    %v1594 = vpop.f32.mrf.mxu0
    %v1595 = vpop.f32.mrf.mxu0
    %v1596 = vpop.f32.mrf.mxu0
    %1597 = vdwg.mxu0
    %1598 = vmatprep.subr.bf16.mxu0 0
    %1599 = vmatpush1.bf16.msra.mxu0 %v1517
    %1600 = vmatprep.subr.bf16.mxu0 0
    %1601 = vmatpush1.bf16.msra.mxu0 %v1516
    %1602 = vmatprep.subr.bf16.mxu0 0
    %1603 = vmatpush1.bf16.msra.mxu0 %v1515
    %1604 = vmatprep.subr.bf16.mxu0 0
    %1605 = vmatpush1.bf16.msra.mxu0 %v1514
    %1606 = vmatprep.subr.bf16.mxu0 0
    %1607 = vmatpush1.bf16.msra.mxu0 %v1513
    %1608 = vmatprep.subr.bf16.mxu0 0
    %1609 = vmatpush1.bf16.msra.mxu0 %v1512
    %1610 = vmatprep.subr.bf16.mxu0 0
    %1611 = vmatpush1.bf16.msra.mxu0 %v1511
    %1612 = vmatprep.subr.bf16.mxu0 0
    %1613 = vmatpush1.bf16.msra.mxu0 %v1510
    %1614 = vmatprep.subr.bf16.mxu0 0
    %1615 = vmatpush2.bf16.msra.mxu0 %v1525
    %1616 = vmatprep.subr.bf16.mxu0 0
    %1617 = vmatpush2.bf16.msra.mxu0 %v1524
    %1618 = vmatprep.subr.bf16.mxu0 0
    %1619 = vmatpush2.bf16.msra.mxu0 %v1523
    %1620 = vmatprep.subr.bf16.mxu0 0
    %1621 = vmatpush2.bf16.msra.mxu0 %v1522
    %1622 = vmatprep.subr.bf16.mxu0 0
    %1623 = vmatpush2.bf16.msra.mxu0 %v1521
    %1624 = vmatprep.subr.bf16.mxu0 0
    %1625 = vmatpush2.bf16.msra.mxu0 %v1520
    %1626 = vmatprep.subr.bf16.mxu0 0
    %1627 = vmatpush2.bf16.msra.mxu0 %v1519
    %1628 = vmatprep.subr.bf16.mxu0 0
    %1629 = vmatpush2.bf16.msra.mxu0 %v1518
    %1630 = vmatprep.mubr.bf16.mxu0 %v953
    %1631 = vmatmul.mubr.bf16.gmra.mxu0 %v952
    %v1632 = vpop.f32.mrf.mxu0
    %v1633 = vadd.f32 %v1593, %v1632
    %v1634 = vpop.f32.mrf.mxu0
    %v1635 = vpop.f32.mrf.mxu0
    %v1636 = vpop.f32.mrf.mxu0
    %1637 = vdwg.mxu0
    %1638 = vmatprep.subr.bf16.mxu0 0
    %1639 = vmatpush1.bf16.msra.mxu0 %v1501
    %1640 = vmatprep.subr.bf16.mxu0 0
    %1641 = vmatpush1.bf16.msra.mxu0 %v1500
    %1642 = vmatprep.subr.bf16.mxu0 0
    %1643 = vmatpush1.bf16.msra.mxu0 %v1499
    %1644 = vmatprep.subr.bf16.mxu0 0
    %1645 = vmatpush1.bf16.msra.mxu0 %v1498
    %1646 = vmatprep.subr.bf16.mxu0 0
    %1647 = vmatpush1.bf16.msra.mxu0 %v1497
    %1648 = vmatprep.subr.bf16.mxu0 0
    %1649 = vmatpush1.bf16.msra.mxu0 %v1496
    %1650 = vmatprep.subr.bf16.mxu0 0
    %1651 = vmatpush1.bf16.msra.mxu0 %v1495
    %1652 = vmatprep.subr.bf16.mxu0 0
    %1653 = vmatpush1.bf16.msra.mxu0 %v1494
    %1654 = vmatprep.subr.bf16.mxu0 0
    %1655 = vmatpush2.bf16.msra.mxu0 %v1509
    %1656 = vmatprep.subr.bf16.mxu0 0
    %1657 = vmatpush2.bf16.msra.mxu0 %v1508
    %1658 = vmatprep.subr.bf16.mxu0 0
    %1659 = vmatpush2.bf16.msra.mxu0 %v1507
    %1660 = vmatprep.subr.bf16.mxu0 0
    %1661 = vmatpush2.bf16.msra.mxu0 %v1506
    %1662 = vmatprep.subr.bf16.mxu0 0
    %1663 = vmatpush2.bf16.msra.mxu0 %v1505
    %1664 = vmatprep.subr.bf16.mxu0 0
    %1665 = vmatpush2.bf16.msra.mxu0 %v1504
    %1666 = vmatprep.subr.bf16.mxu0 0
    %1667 = vmatpush2.bf16.msra.mxu0 %v1503
    %1668 = vmatprep.subr.bf16.mxu0 0
    %1669 = vmatpush2.bf16.msra.mxu0 %v1502
    %1670 = vmatprep.mubr.bf16.mxu0 %v963
    %1671 = vmatmul.mubr.bf16.gmra.mxu0 %v962
    %v1672 = vpop.f32.mrf.mxu0
    %v1673 = vadd.f32 0.0, %v1672
    %v1674 = vpop.f32.mrf.mxu0
    %v1675 = vpop.f32.mrf.mxu0
    %v1676 = vpop.f32.mrf.mxu0
    %1677 = vdwg.mxu0
    %1678 = vmatprep.subr.bf16.mxu0 0
    %1679 = vmatpush1.bf16.msra.mxu0 %v1517
    %1680 = vmatprep.subr.bf16.mxu0 0
    %1681 = vmatpush1.bf16.msra.mxu0 %v1516
    %1682 = vmatprep.subr.bf16.mxu0 0
    %1683 = vmatpush1.bf16.msra.mxu0 %v1515
    %1684 = vmatprep.subr.bf16.mxu0 0
    %1685 = vmatpush1.bf16.msra.mxu0 %v1514
    %1686 = vmatprep.subr.bf16.mxu0 0
    %1687 = vmatpush1.bf16.msra.mxu0 %v1513
    %1688 = vmatprep.subr.bf16.mxu0 0
    %1689 = vmatpush1.bf16.msra.mxu0 %v1512
    %1690 = vmatprep.subr.bf16.mxu0 0
    %1691 = vmatpush1.bf16.msra.mxu0 %v1511
    %1692 = vmatprep.subr.bf16.mxu0 0
    %1693 = vmatpush1.bf16.msra.mxu0 %v1510
    %1694 = vmatprep.subr.bf16.mxu0 0
    %1695 = vmatpush2.bf16.msra.mxu0 %v1525
    %1696 = vmatprep.subr.bf16.mxu0 0
    %1697 = vmatpush2.bf16.msra.mxu0 %v1524
    %1698 = vmatprep.subr.bf16.mxu0 0
    %1699 = vmatpush2.bf16.msra.mxu0 %v1523
    %1700 = vmatprep.subr.bf16.mxu0 0
    %1701 = vmatpush2.bf16.msra.mxu0 %v1522
    %1702 = vmatprep.subr.bf16.mxu0 0
    %1703 = vmatpush2.bf16.msra.mxu0 %v1521
    %1704 = vmatprep.subr.bf16.mxu0 0
    %1705 = vmatpush2.bf16.msra.mxu0 %v1520
    %1706 = vmatprep.subr.bf16.mxu0 0
    %1707 = vmatpush2.bf16.msra.mxu0 %v1519
    %1708 = vmatprep.subr.bf16.mxu0 0
    %1709 = vmatpush2.bf16.msra.mxu0 %v1518
    %1710 = vmatprep.mubr.bf16.mxu0 %v965
    %1711 = vmatmul.mubr.bf16.gmra.mxu0 %v964
    %v1712 = vpop.f32.mrf.mxu0
    %v1713 = vadd.f32 %v1673, %v1712
    %v1714 = vpop.f32.mrf.mxu0
    %v1715 = vpop.f32.mrf.mxu0
    %v1716 = vpop.f32.mrf.mxu0
    %1717 = vdwg.mxu0
    %v1718 = vadd.f32 %v1633, %v1713
    %v1719 = vld [vmem:[%s8] sm:$0x1]
    %v1721 = vlaneseq
    %v1722 = vshrl.u32 %v1721, 7
    %v1723 = vsub.s32 0, %v1722
    %v1724 = vrot.slane %v1719, %v1723
    %v1726 = vadd.f32 %v1718, %v1724
    %vm1727 = vcmask 23552
    %1728 = vst.msk [vmem:[%s9] sm:$0xff] %vm1727, %v1726
    // Predicated region
    $region54: #{beta2measurement.1} parent=1 // pred_check
      _
    $region55: #{beta2measurement.1} parent=1 // pred_check_branch
      %1730 = sbr.rel (0) target = $region57
    $region56: #{beta2measurement.1} parent=1 // pred_region
      _
    $region57: #{beta2measurement.1} parent=1 // pred_fallthru
      _
    // Predicated region
    $region58: #{beta2measurement.1} parent=1 // pred_check
      _
    $region59: #{beta2measurement.1} parent=1 // pred_check_branch
      %1732 = sbr.rel (0) target = $region61
    $region60: #{beta2measurement.1} parent=1 // pred_region
      _
    $region61: #{beta2measurement.1} parent=1 // pred_fallthru
      _
    %1733 = vsyncpa [#allocation3], 1
    %1734 = vsyncpa [#allocation5], 1
    %1735 = vsyncpa [#allocation8], 1

</llo_original>
